<compile_context>
chip_gen: v6e
topology: v6e:2x2x1
jax: 0.10.0
libtpu: 0.0.40
codegen_flags: <defaults>
</compile_context>

<pallas_src>
import functools

import jax
import jax.numpy as jnp
from jax import lax
from jax.experimental import pallas as pl
from jax.experimental.pallas import tpu as pltpu

VMEM_LIMIT_BYTES = 48 * 1024 * 1024  # fits v7x (64 MiB physical) and v5e/v6e


def _round_up(x, m):
    return ((x + m - 1) // m) * m


def _pick_tile(dim, candidates):
    for c in candidates:
        if c <= dim and dim % c == 0:
            return c
    return dim  # full extent (always legal for a BlockSpec dim)


def _largest_divisor_leq(n, cap):
    for d in range(min(cap, n), 0, -1):
        if n % d == 0:
            return d
    return 1


# --------------------------------------------------------------------------
# 3x3 dilated-conv branch: grid = (N, H_tiles, Cout_tiles, Cin_tiles)
# x is passed three times (one Blocked, row-shifted view per kernel row kh).
# --------------------------------------------------------------------------
def _aspp_dilated_kernel(x0_ref, x1_ref, x2_ref, w_ref, bias_ref, o_ref,
                         acc_ref, *, W_out, rate):
    """x{kh}_ref: (1, th, Wp, kt)       bf16 input rows for tap row kh
       w_ref:     (n_ci*9, kt, ct)      BN-scale-folded weight tiles (bf16), resident
       bias_ref:  (1, ct)               folded BN bias (f32)
       o_ref:     (1, th*W_out, ct)     output rows for this H tile
       acc_ref:   (th*W_out, ct)        f32 accumulator scratch
    """
    ci = pl.program_id(3)
    th = x0_ref.shape[1]
    cin_t = x0_ref.shape[3]
    x_refs = (x0_ref, x1_ref, x2_ref)

    contrib = None
    for kh in range(3):
        for kw in range(3):
            win = x_refs[kh][0, :, pl.ds(kw * rate, W_out), :]   # (th, W_out, kt)
            w_kk = w_ref[ci * 9 + kh * 3 + kw]                   # (kt, ct)
            part = jnp.dot(win.reshape(th * W_out, cin_t), w_kk,
                           preferred_element_type=jnp.float32)
            contrib = part if contrib is None else contrib + part

    @pl.when(ci == 0)
    def _first():
        acc_ref[...] = contrib            # no memset + RMW on the first step

    @pl.when(ci > 0)
    def _rest():
        acc_ref[...] += contrib

    @pl.when(ci == pl.num_programs(3) - 1)
    def _finalize():
        y = acc_ref[...] + bias_ref[...]  # fused BN bias (scale folded into w)
        o_ref[...] = jnp.maximum(y, 0.0).astype(o_ref.dtype)[None]


# --------------------------------------------------------------------------
# rate==1 (1x1 conv) branch: tiled GEMM (M, K) x (K, N) + bias + ReLU,
# weights fully resident as (n_k, kt, cout_pad) tiles.
# --------------------------------------------------------------------------
def _aspp_1x1_kernel(x_ref, w_ref, bias_ref, o_ref, acc_ref):
    k = pl.program_id(2)
    contrib = jnp.dot(x_ref[...], w_ref[k], preferred_element_type=jnp.float32)

    @pl.when(k == 0)
    def _first():
        acc_ref[...] = contrib

    @pl.when(k > 0)
    def _rest():
        acc_ref[...] += contrib

    @pl.when(k == pl.num_programs(2) - 1)
    def _finalize():
        o_ref[...] = jnp.maximum(acc_ref[...] + bias_ref[...], 0.0).astype(o_ref.dtype)


# --------------------------------------------------------------------------
# Wrapper
# --------------------------------------------------------------------------
def aspp_forward(x_nchw, weight_hwio, bn_scale, bn_bias, *, rate,
                 compute_dtype=jnp.bfloat16, out_dtype=jnp.float32,
                 h_tile=None, cin_tile=None, cout_tile=None):
    """ASPP forward: dilated conv (no bias) + eval-mode BN + ReLU.

    x_nchw:      (N, Cin, H, W) float32   (PyTorch layout)
    weight_hwio: (KH, KW, Cin, Cout) float32
    bn_scale:    (Cout,) float32   gamma / sqrt(var + eps)
    bn_bias:     (Cout,) float32   beta - mean * scale
    returns:     (N, Cout, H, W) in `out_dtype` (float32 by default)
    """
    N, Cin, H, W = x_nchw.shape
    KH, KW, _, Cout = weight_hwio.shape

    # Fold BN scale into the conv weights (zero runtime cost); bias stays separate.
    w_fold = weight_hwio * bn_scale[None, None, None, :]

    # Lane-dense output: pad Cout up to a multiple of 128.
    cout_pad = _round_up(Cout, 128)
    if cout_pad != Cout:
        w_fold = jnp.pad(w_fold, ((0, 0), (0, 0), (0, 0), (0, cout_pad - Cout)))
        bias = jnp.pad(bn_bias, (0, cout_pad - Cout))
    else:
        bias = bn_bias
    bias2d = bias.reshape(1, cout_pad).astype(jnp.float32)
    w_c = w_fold.astype(compute_dtype)              # bf16 weights, f32 accumulation

    ct = cout_tile or _pick_tile(cout_pad, (512, 256, 128))
    assert cout_pad % ct == 0 and ct % 128 == 0, \
        "cout_tile must divide the padded Cout and be a multiple of 128"

    # Cast to bf16 *before* the layout transpose (halves transpose HBM traffic).
    x_nhwc = jnp.transpose(x_nchw.astype(compute_dtype), (0, 2, 3, 1))

    if KH == 1 and KW == 1:
        # ---- 1x1 conv == GEMM over (N*H*W, Cin) x (Cin, Cout_pad) ----
        kt = cin_tile or _pick_tile(Cin, (512, 256, 128))
        assert Cin % kt == 0 and (kt == Cin or kt % 128 == 0), \
            "cin_tile must divide Cin and be a multiple of 128 (or Cin itself)"
        n_k = Cin // kt

        M = N * H * W
        tm = 512 if M >= 512 else _round_up(M, 8)
        M_pad = _round_up(M, tm)
        x2d = x_nhwc.reshape(M, Cin)
        if M_pad != M:
            x2d = jnp.pad(x2d, ((0, M_pad - M), (0, 0)))
        w3d = w_c.reshape(n_k, kt, cout_pad)        # resident weight tiles

        out2d = pl.pallas_call(
            _aspp_1x1_kernel,
            out_shape=jax.ShapeDtypeStruct((M_pad, cout_pad), out_dtype),
            grid_spec=pltpu.PrefetchScalarGridSpec(
                num_scalar_prefetch=0,
                grid=(M_pad // tm, cout_pad // ct, n_k),
                in_specs=[
                    pl.BlockSpec((tm, kt), lambda i, j, k: (i, k)),
                    pl.BlockSpec((n_k, kt, ct), lambda i, j, k: (0, 0, j)),
                    pl.BlockSpec((1, ct), lambda i, j, k: (0, j)),
                ],
                out_specs=pl.BlockSpec((tm, ct), lambda i, j, k: (i, j)),
                scratch_shapes=[pltpu.VMEM((tm, ct), jnp.float32)],
            ),
            compiler_params=pltpu.CompilerParams(
                dimension_semantics=("parallel", "parallel", "arbitrary"),
                vmem_limit_bytes=VMEM_LIMIT_BYTES),
        )(x2d, w3d, bias2d)
        out_nhwc = out2d[:M].reshape(N, H, W, cout_pad)
    else:
        # ---- 3x3 dilated conv ('same' padding = rate) ----
        assert KH == 3 and KW == 3, "ASPP_module uses 1x1 (rate==1) or 3x3 kernels"
        kt = cin_tile or _pick_tile(Cin, (256, 128))
        assert Cin % kt == 0 and (kt == Cin or kt % 128 == 0), \
            "cin_tile must divide Cin and be a multiple of 128 (or Cin itself)"
        n_ci = Cin // kt

        # h_tile must divide the dilation rate so every tap row kh maps to a
        # block-aligned window of the padded input (pure Blocked indexing).
        th = h_tile or _largest_divisor_leq(rate, 16)
        assert rate % th == 0, "h_tile must divide the dilation rate"
        rshift = rate // th

        H_pad = _round_up(H, th)
        w_align = 16 if (jnp.dtype(out_dtype).itemsize == 2 and th % 2 == 1) else 8
        W_out = _round_up(W, w_align)               # layout-free reshape + clean stores
        Hp = H_pad + 2 * rate
        Wp = _round_up(W_out + 2 * rate, 8)
        x_p = jnp.pad(
            x_nhwc,
            ((0, 0), (rate, Hp - rate - H), (rate, Wp - rate - W), (0, 0)))

        # Resident weight tiles: (ci, kh, kw) flattened on the leading dim so the
        # kernel selects a tile with one dynamic leading index (no re-DMA per step).
        w_tiles = (w_c.reshape(3, 3, n_ci, kt, cout_pad)
                       .transpose(2, 0, 1, 3, 4)
                       .reshape(n_ci * 9, kt, cout_pad))

        kernel = functools.partial(_aspp_dilated_kernel, W_out=W_out, rate=rate)

        def x_index(n, h, co, ci, *, kh):
            return (n, h + kh * rshift, 0, ci)

        x_specs = [pl.BlockSpec((1, th, Wp, kt), functools.partial(x_index, kh=kh))
                   for kh in range(3)]

        out_flat = pl.pallas_call(
            kernel,
            out_shape=jax.ShapeDtypeStruct((N, H_pad * W_out, cout_pad), out_dtype),
            grid_spec=pltpu.PrefetchScalarGridSpec(
                num_scalar_prefetch=0,
                grid=(N, H_pad // th, cout_pad // ct, n_ci),
                in_specs=x_specs + [
                    pl.BlockSpec((n_ci * 9, kt, ct), lambda n, h, co, ci: (0, 0, co)),
                    pl.BlockSpec((1, ct), lambda n, h, co, ci: (0, co)),
                ],
                out_specs=pl.BlockSpec((1, th * W_out, ct),
                                       lambda n, h, co, ci: (n, h, co)),
                scratch_shapes=[pltpu.VMEM((th * W_out, ct), jnp.float32)],
            ),
            compiler_params=pltpu.CompilerParams(
                dimension_semantics=("parallel", "parallel", "parallel", "arbitrary"),
                vmem_limit_bytes=VMEM_LIMIT_BYTES),
        )(x_p, x_p, x_p, w_tiles, bias2d)
        out_nhwc = out_flat.reshape(N, H_pad, W_out, cout_pad)[:, :H, :W, :]

    out = jnp.transpose(out_nhwc[..., :Cout], (0, 3, 1, 2))   # back to NCHW
    return out


# --------------------------------------------------------------------------
# Parameter init matching ASPP_module.__init__ semantics
# --------------------------------------------------------------------------
def init_aspp_params(key, inplanes, planes, rate):
    kh = kw = 1 if rate == 1 else 3
    # kaiming_normal_ (fan_in, a=0): std = sqrt(2 / (Cin * KH * KW))
    fan_in = inplanes * kh * kw
    std = (2.0 / fan_in) ** 0.5
    w_oihw = jax.random.normal(key, (planes, inplanes, kh, kw), jnp.float32) * std
    w_hwio = jnp.transpose(w_oihw, (2, 3, 1, 0))    # (KH, KW, Cin, Cout)

    # BatchNorm2d init: gamma=1, beta=0, running_mean=0, running_var=1, eps=1e-5
    eps = 1e-5
    gamma = jnp.ones((planes,), jnp.float32)
    beta = jnp.zeros((planes,), jnp.float32)
    running_mean = jnp.zeros((planes,), jnp.float32)
    running_var = jnp.ones((planes,), jnp.float32)
    scale = gamma / jnp.sqrt(running_var + eps)
    bias = beta - running_mean * scale
    return w_hwio, scale, bias


# --------------------------------------------------------------------------
# Pure-JAX reference (same bf16 quantization of inputs/weights, f32 accumulation)
# --------------------------------------------------------------------------
def _reference(x_nchw, w_hwio, scale, bias, rate, compute_dtype):
    KH = w_hwio.shape[0]
    pad = 0 if KH == 1 else rate
    w_fold = (w_hwio * scale[None, None, None, :]).astype(compute_dtype).astype(jnp.float32)
    x = x_nchw.astype(compute_dtype).astype(jnp.float32)
    y = lax.conv_general_dilated(
        x, w_fold,
        window_strides=(1, 1),
        padding=((pad, pad), (pad, pad)),
        rhs_dilation=(rate, rate),
        dimension_numbers=("NCHW", "HWIO", "NCHW"),
        preferred_element_type=jnp.float32,
    )
    y = y + bias[None, :, None, None]
    return jnp.maximum(y, 0.0)


if __name__ == "__main__":
    root = jax.random.PRNGKey(0)

    def run_case(case_id, N, Cin, Cout, H, W, rate, tol=1e-3, **kw):
        k1, k2 = jax.random.split(jax.random.fold_in(root, case_id))
        x = jax.random.normal(k1, (N, Cin, H, W), jnp.float32)
        w_hwio, scale, bias = init_aspp_params(k2, Cin, Cout, rate)
        out = jax.block_until_ready(
            aspp_forward(x, w_hwio, scale, bias, rate=rate, **kw))
        ref = _reference(x, w_hwio, scale, bias, rate, jnp.bfloat16)
        assert out.shape == (N, Cout, H, W), f"case {case_id}: bad shape {out.shape}"
        err = float(jnp.max(jnp.abs(out.astype(jnp.float32) - ref)))
        assert err < tol, f"case {case_id}: mismatch vs reference, max err {err}"

    # 1) spec shapes (batch=2, channels=4, spatial=16), rate=2 -> 3x3 dilated
    #    branch with H tiling (th=2) and lane-padded Cout.
    run_case(1, N=2, Cin=4, Cout=8, H=16, W=16, rate=2)
    # 2) rate=1 -> 1x1 conv dispatched to the tiled GEMM kernel.
    run_case(2, N=2, Cin=4, Cout=8, H=16, W=16, rate=1)
    # 3) odd spatial size (W padded to a multiple of 8), rate=3 -> th=3.
    run_case(3, N=1, Cin=8, Cout=8, H=15, W=15, rate=3)
    # 4) multi-step Cin reduction: accumulator init/finalize + resident-weight
    #    dynamic tile indexing.
    run_case(4, N=1, Cin=256, Cout=8, H=8, W=8, rate=2, cin_tile=128)
    # 5) 1x1 branch with a real Cin reduction (resident weight tiles, w_ref[k]).
    run_case(5, N=2, Cin=256, Cout=8, H=8, W=8, rate=1, cin_tile=128)
    # 6) bf16 output path (halved writeback on the memory-bound branch).
    run_case(6, N=2, Cin=4, Cout=8, H=16, W=16, rate=2,
             out_dtype=jnp.bfloat16, tol=5e-2)

    print("KERNEL_OK")
</pallas_src>

<mosaic_0001>
module attributes {stable_mosaic.version = 11 : i64} {
  func.func @_aspp_dilated_kernel(%arg0: i32, %arg1: i32, %arg2: i32, %arg3: i32, %arg4: memref<1x2x24x4xbf16, #tpu.memory_space<vmem>>, %arg5: memref<1x2x24x4xbf16, #tpu.memory_space<vmem>>, %arg6: memref<1x2x24x4xbf16, #tpu.memory_space<vmem>>, %arg7: memref<9x4x128xbf16, #tpu.memory_space<vmem>>, %arg8: memref<1x128xf32, #tpu.memory_space<vmem>>, %arg9: memref<1x32x128xf32, #tpu.memory_space<vmem>>, %arg10: memref<32x128xf32, #tpu.memory_space<vmem>>) attributes {dimension_semantics = [#tpu.dimension_semantics<parallel>, #tpu.dimension_semantics<parallel>, #tpu.dimension_semantics<parallel>, #tpu.dimension_semantics<arbitrary>], iteration_bounds = array<i64: 2, 8, 1, 1>, scalar_prefetch = 0 : i64, scratch_operands = 1 : i64, tpu.core_type = #tpu.core_type<tc>, window_params = [{transform_indices = @transform_0, window_bounds = array<i64: 1, 2, 24, 4>}, {transform_indices = @transform_1, window_bounds = array<i64: 1, 2, 24, 4>}, {transform_indices = @transform_2, window_bounds = array<i64: 1, 2, 24, 4>}, {transform_indices = @transform_3, window_bounds = array<i64: 9, 4, 128>}, {transform_indices = @transform_4, window_bounds = array<i64: 1, 128>}, {transform_indices = @transform_5, window_bounds = array<i64: 1, 32, 128>}]} {
    %c0 = arith.constant 0 : index
    %c0_0 = arith.constant 0 : index
    %c0_1 = arith.constant 0 : index
    %c0_2 = arith.constant 0 : index
    %0 = vector.load %arg4[%c0, %c0_0, %c0_1, %c0_2] : memref<1x2x24x4xbf16, #tpu.memory_space<vmem>>, vector<1x2x16x4xbf16>
    %1 = vector.shape_cast %0 : vector<1x2x16x4xbf16> to vector<2x16x4xbf16>
    %c9_i32 = arith.constant 9 : i32
    %2 = arith.muli %arg3, %c9_i32 : i32
    %c0_i32 = arith.constant 0 : i32
    %3 = arith.addi %2, %c0_i32 : i32
    %c0_i32_3 = arith.constant 0 : i32
    %4 = arith.addi %3, %c0_i32_3 : i32
    %5 = arith.index_cast %4 : i32 to index
    %c0_4 = arith.constant 0 : index
    %c0_5 = arith.constant 0 : index
    %6 = vector.load %arg7[%5, %c0_4, %c0_5] : memref<9x4x128xbf16, #tpu.memory_space<vmem>>, vector<1x4x128xbf16>
    %7 = vector.shape_cast %6 : vector<1x4x128xbf16> to vector<4x128xbf16>
    %8 = vector.shape_cast %1 : vector<2x16x4xbf16> to vector<32x4xbf16>
    %cst = arith.constant dense<0.000000e+00> : vector<32x128xf32>
    %9 = tpu.matmul %8, %7, %cst {dimension_numbers = #tpu.dot_dimension_numbers<[1], [0], [0], [1], [0, 0, 1, 1], [], []>} : vector<32x4xbf16>, vector<4x128xbf16>, vector<32x128xf32> -> vector<32x128xf32>
    %c0_6 = arith.constant 0 : index
    %c0_7 = arith.constant 0 : index
    %c2 = arith.constant 2 : index
    %c0_8 = arith.constant 0 : index
    %10 = vector.load %arg4[%c0_6, %c0_7, %c2, %c0_8] : memref<1x2x24x4xbf16, #tpu.memory_space<vmem>>, vector<1x2x16x4xbf16>
    %11 = vector.shape_cast %10 : vector<1x2x16x4xbf16> to vector<2x16x4xbf16>
    %c9_i32_9 = arith.constant 9 : i32
    %12 = arith.muli %arg3, %c9_i32_9 : i32
    %c0_i32_10 = arith.constant 0 : i32
    %13 = arith.addi %12, %c0_i32_10 : i32
    %c1_i32 = arith.constant 1 : i32
    %14 = arith.addi %13, %c1_i32 : i32
    %15 = arith.index_cast %14 : i32 to index
    %c0_11 = arith.constant 0 : index
    %c0_12 = arith.constant 0 : index
    %16 = vector.load %arg7[%15, %c0_11, %c0_12] : memref<9x4x128xbf16, #tpu.memory_space<vmem>>, vector<1x4x128xbf16>
    %17 = vector.shape_cast %16 : vector<1x4x128xbf16> to vector<4x128xbf16>
    %18 = vector.shape_cast %11 : vector<2x16x4xbf16> to vector<32x4xbf16>
    %cst_13 = arith.constant dense<0.000000e+00> : vector<32x128xf32>
    %19 = tpu.matmul %18, %17, %cst_13 {dimension_numbers = #tpu.dot_dimension_numbers<[1], [0], [0], [1], [0, 0, 1, 1], [], []>} : vector<32x4xbf16>, vector<4x128xbf16>, vector<32x128xf32> -> vector<32x128xf32>
    %20 = arith.addf %9, %19 : vector<32x128xf32>
    %c0_14 = arith.constant 0 : index
    %c0_15 = arith.constant 0 : index
    %c4 = arith.constant 4 : index
    %c0_16 = arith.constant 0 : index
    %21 = vector.load %arg4[%c0_14, %c0_15, %c4, %c0_16] : memref<1x2x24x4xbf16, #tpu.memory_space<vmem>>, vector<1x2x16x4xbf16>
    %22 = vector.shape_cast %21 : vector<1x2x16x4xbf16> to vector<2x16x4xbf16>
    %c9_i32_17 = arith.constant 9 : i32
    %23 = arith.muli %arg3, %c9_i32_17 : i32
    %c0_i32_18 = arith.constant 0 : i32
    %24 = arith.addi %23, %c0_i32_18 : i32
    %c2_i32 = arith.constant 2 : i32
    %25 = arith.addi %24, %c2_i32 : i32
    %26 = arith.index_cast %25 : i32 to index
    %c0_19 = arith.constant 0 : index
    %c0_20 = arith.constant 0 : index
    %27 = vector.load %arg7[%26, %c0_19, %c0_20] : memref<9x4x128xbf16, #tpu.memory_space<vmem>>, vector<1x4x128xbf16>
    %28 = vector.shape_cast %27 : vector<1x4x128xbf16> to vector<4x128xbf16>
    %29 = vector.shape_cast %22 : vector<2x16x4xbf16> to vector<32x4xbf16>
    %cst_21 = arith.constant dense<0.000000e+00> : vector<32x128xf32>
    %30 = tpu.matmul %29, %28, %cst_21 {dimension_numbers = #tpu.dot_dimension_numbers<[1], [0], [0], [1], [0, 0, 1, 1], [], []>} : vector<32x4xbf16>, vector<4x128xbf16>, vector<32x128xf32> -> vector<32x128xf32>
    %31 = arith.addf %20, %30 : vector<32x128xf32>
    %c0_22 = arith.constant 0 : index
    %c0_23 = arith.constant 0 : index
    %c0_24 = arith.constant 0 : index
    %c0_25 = arith.constant 0 : index
    %32 = vector.load %arg5[%c0_22, %c0_23, %c0_24, %c0_25] : memref<1x2x24x4xbf16, #tpu.memory_space<vmem>>, vector<1x2x16x4xbf16>
    %33 = vector.shape_cast %32 : vector<1x2x16x4xbf16> to vector<2x16x4xbf16>
    %c9_i32_26 = arith.constant 9 : i32
    %34 = arith.muli %arg3, %c9_i32_26 : i32
    %c3_i32 = arith.constant 3 : i32
    %35 = arith.addi %34, %c3_i32 : i32
    %c0_i32_27 = arith.constant 0 : i32
    %36 = arith.addi %35, %c0_i32_27 : i32
    %37 = arith.index_cast %36 : i32 to index
    %c0_28 = arith.constant 0 : index
    %c0_29 = arith.constant 0 : index
    %38 = vector.load %arg7[%37, %c0_28, %c0_29] : memref<9x4x128xbf16, #tpu.memory_space<vmem>>, vector<1x4x128xbf16>
    %39 = vector.shape_cast %38 : vector<1x4x128xbf16> to vector<4x128xbf16>
    %40 = vector.shape_cast %33 : vector<2x16x4xbf16> to vector<32x4xbf16>
    %cst_30 = arith.constant dense<0.000000e+00> : vector<32x128xf32>
    %41 = tpu.matmul %40, %39, %cst_30 {dimension_numbers = #tpu.dot_dimension_numbers<[1], [0], [0], [1], [0, 0, 1, 1], [], []>} : vector<32x4xbf16>, vector<4x128xbf16>, vector<32x128xf32> -> vector<32x128xf32>
    %42 = arith.addf %31, %41 : vector<32x128xf32>
    %c0_31 = arith.constant 0 : index
    %c0_32 = arith.constant 0 : index
    %c2_33 = arith.constant 2 : index
    %c0_34 = arith.constant 0 : index
    %43 = vector.load %arg5[%c0_31, %c0_32, %c2_33, %c0_34] : memref<1x2x24x4xbf16, #tpu.memory_space<vmem>>, vector<1x2x16x4xbf16>
    %44 = vector.shape_cast %43 : vector<1x2x16x4xbf16> to vector<2x16x4xbf16>
    %c9_i32_35 = arith.constant 9 : i32
    %45 = arith.muli %arg3, %c9_i32_35 : i32
    %c3_i32_36 = arith.constant 3 : i32
    %46 = arith.addi %45, %c3_i32_36 : i32
    %c1_i32_37 = arith.constant 1 : i32
    %47 = arith.addi %46, %c1_i32_37 : i32
    %48 = arith.index_cast %47 : i32 to index
    %c0_38 = arith.constant 0 : index
    %c0_39 = arith.constant 0 : index
    %49 = vector.load %arg7[%48, %c0_38, %c0_39] : memref<9x4x128xbf16, #tpu.memory_space<vmem>>, vector<1x4x128xbf16>
    %50 = vector.shape_cast %49 : vector<1x4x128xbf16> to vector<4x128xbf16>
    %51 = vector.shape_cast %44 : vector<2x16x4xbf16> to vector<32x4xbf16>
    %cst_40 = arith.constant dense<0.000000e+00> : vector<32x128xf32>
    %52 = tpu.matmul %51, %50, %cst_40 {dimension_numbers = #tpu.dot_dimension_numbers<[1], [0], [0], [1], [0, 0, 1, 1], [], []>} : vector<32x4xbf16>, vector<4x128xbf16>, vector<32x128xf32> -> vector<32x128xf32>
    %53 = arith.addf %42, %52 : vector<32x128xf32>
    %c0_41 = arith.constant 0 : index
    %c0_42 = arith.constant 0 : index
    %c4_43 = arith.constant 4 : index
    %c0_44 = arith.constant 0 : index
    %54 = vector.load %arg5[%c0_41, %c0_42, %c4_43, %c0_44] : memref<1x2x24x4xbf16, #tpu.memory_space<vmem>>, vector<1x2x16x4xbf16>
    %55 = vector.shape_cast %54 : vector<1x2x16x4xbf16> to vector<2x16x4xbf16>
    %c9_i32_45 = arith.constant 9 : i32
    %56 = arith.muli %arg3, %c9_i32_45 : i32
    %c3_i32_46 = arith.constant 3 : i32
    %57 = arith.addi %56, %c3_i32_46 : i32
    %c2_i32_47 = arith.constant 2 : i32
    %58 = arith.addi %57, %c2_i32_47 : i32
    %59 = arith.index_cast %58 : i32 to index
    %c0_48 = arith.constant 0 : index
    %c0_49 = arith.constant 0 : index
    %60 = vector.load %arg7[%59, %c0_48, %c0_49] : memref<9x4x128xbf16, #tpu.memory_space<vmem>>, vector<1x4x128xbf16>
    %61 = vector.shape_cast %60 : vector<1x4x128xbf16> to vector<4x128xbf16>
    %62 = vector.shape_cast %55 : vector<2x16x4xbf16> to vector<32x4xbf16>
    %cst_50 = arith.constant dense<0.000000e+00> : vector<32x128xf32>
    %63 = tpu.matmul %62, %61, %cst_50 {dimension_numbers = #tpu.dot_dimension_numbers<[1], [0], [0], [1], [0, 0, 1, 1], [], []>} : vector<32x4xbf16>, vector<4x128xbf16>, vector<32x128xf32> -> vector<32x128xf32>
    %64 = arith.addf %53, %63 : vector<32x128xf32>
    %c0_51 = arith.constant 0 : index
    %c0_52 = arith.constant 0 : index
    %c0_53 = arith.constant 0 : index
    %c0_54 = arith.constant 0 : index
    %65 = vector.load %arg6[%c0_51, %c0_52, %c0_53, %c0_54] : memref<1x2x24x4xbf16, #tpu.memory_space<vmem>>, vector<1x2x16x4xbf16>
    %66 = vector.shape_cast %65 : vector<1x2x16x4xbf16> to vector<2x16x4xbf16>
    %c9_i32_55 = arith.constant 9 : i32
    %67 = arith.muli %arg3, %c9_i32_55 : i32
    %c6_i32 = arith.constant 6 : i32
    %68 = arith.addi %67, %c6_i32 : i32
    %c0_i32_56 = arith.constant 0 : i32
    %69 = arith.addi %68, %c0_i32_56 : i32
    %70 = arith.index_cast %69 : i32 to index
    %c0_57 = arith.constant 0 : index
    %c0_58 = arith.constant 0 : index
    %71 = vector.load %arg7[%70, %c0_57, %c0_58] : memref<9x4x128xbf16, #tpu.memory_space<vmem>>, vector<1x4x128xbf16>
    %72 = vector.shape_cast %71 : vector<1x4x128xbf16> to vector<4x128xbf16>
    %73 = vector.shape_cast %66 : vector<2x16x4xbf16> to vector<32x4xbf16>
    %cst_59 = arith.constant dense<0.000000e+00> : vector<32x128xf32>
    %74 = tpu.matmul %73, %72, %cst_59 {dimension_numbers = #tpu.dot_dimension_numbers<[1], [0], [0], [1], [0, 0, 1, 1], [], []>} : vector<32x4xbf16>, vector<4x128xbf16>, vector<32x128xf32> -> vector<32x128xf32>
    %75 = arith.addf %64, %74 : vector<32x128xf32>
    %c0_60 = arith.constant 0 : index
    %c0_61 = arith.constant 0 : index
    %c2_62 = arith.constant 2 : index
    %c0_63 = arith.constant 0 : index
    %76 = vector.load %arg6[%c0_60, %c0_61, %c2_62, %c0_63] : memref<1x2x24x4xbf16, #tpu.memory_space<vmem>>, vector<1x2x16x4xbf16>
    %77 = vector.shape_cast %76 : vector<1x2x16x4xbf16> to vector<2x16x4xbf16>
    %c9_i32_64 = arith.constant 9 : i32
    %78 = arith.muli %arg3, %c9_i32_64 : i32
    %c6_i32_65 = arith.constant 6 : i32
    %79 = arith.addi %78, %c6_i32_65 : i32
    %c1_i32_66 = arith.constant 1 : i32
    %80 = arith.addi %79, %c1_i32_66 : i32
    %81 = arith.index_cast %80 : i32 to index
    %c0_67 = arith.constant 0 : index
    %c0_68 = arith.constant 0 : index
    %82 = vector.load %arg7[%81, %c0_67, %c0_68] : memref<9x4x128xbf16, #tpu.memory_space<vmem>>, vector<1x4x128xbf16>
    %83 = vector.shape_cast %82 : vector<1x4x128xbf16> to vector<4x128xbf16>
    %84 = vector.shape_cast %77 : vector<2x16x4xbf16> to vector<32x4xbf16>
    %cst_69 = arith.constant dense<0.000000e+00> : vector<32x128xf32>
    %85 = tpu.matmul %84, %83, %cst_69 {dimension_numbers = #tpu.dot_dimension_numbers<[1], [0], [0], [1], [0, 0, 1, 1], [], []>} : vector<32x4xbf16>, vector<4x128xbf16>, vector<32x128xf32> -> vector<32x128xf32>
    %86 = arith.addf %75, %85 : vector<32x128xf32>
    %c0_70 = arith.constant 0 : index
    %c0_71 = arith.constant 0 : index
    %c4_72 = arith.constant 4 : index
    %c0_73 = arith.constant 0 : index
    %87 = vector.load %arg6[%c0_70, %c0_71, %c4_72, %c0_73] : memref<1x2x24x4xbf16, #tpu.memory_space<vmem>>, vector<1x2x16x4xbf16>
    %88 = vector.shape_cast %87 : vector<1x2x16x4xbf16> to vector<2x16x4xbf16>
    %c9_i32_74 = arith.constant 9 : i32
    %89 = arith.muli %arg3, %c9_i32_74 : i32
    %c6_i32_75 = arith.constant 6 : i32
    %90 = arith.addi %89, %c6_i32_75 : i32
    %c2_i32_76 = arith.constant 2 : i32
    %91 = arith.addi %90, %c2_i32_76 : i32
    %92 = arith.index_cast %91 : i32 to index
    %c0_77 = arith.constant 0 : index
    %c0_78 = arith.constant 0 : index
    %93 = vector.load %arg7[%92, %c0_77, %c0_78] : memref<9x4x128xbf16, #tpu.memory_space<vmem>>, vector<1x4x128xbf16>
    %94 = vector.shape_cast %93 : vector<1x4x128xbf16> to vector<4x128xbf16>
    %95 = vector.shape_cast %88 : vector<2x16x4xbf16> to vector<32x4xbf16>
    %cst_79 = arith.constant dense<0.000000e+00> : vector<32x128xf32>
    %96 = tpu.matmul %95, %94, %cst_79 {dimension_numbers = #tpu.dot_dimension_numbers<[1], [0], [0], [1], [0, 0, 1, 1], [], []>} : vector<32x4xbf16>, vector<4x128xbf16>, vector<32x128xf32> -> vector<32x128xf32>
    %97 = arith.addf %86, %96 : vector<32x128xf32>
    %c0_i32_80 = arith.constant 0 : i32
    %98 = arith.cmpi eq, %arg3, %c0_i32_80 : i32
    %99 = arith.extui %98 : i1 to i32
    %c0_i32_81 = arith.constant 0 : i32
    %100 = arith.cmpi ne, %99, %c0_i32_81 : i32
    scf.if %100 {
      %c0_86 = arith.constant 0 : index
      %c0_87 = arith.constant 0 : index
      %107 = vector.load %arg10[%c0_86, %c0_87] : memref<32x128xf32, #tpu.memory_space<vmem>>, vector<32x128xf32>
      tpu.vector_store %arg10[%c0_86, %c0_87], %97 {strides = array<i32>} : memref<32x128xf32, #tpu.memory_space<vmem>>, vector<32x128xf32>,
    } else {
    }
    %c0_i32_82 = arith.constant 0 : i32
    %101 = arith.cmpi sgt, %arg3, %c0_i32_82 : i32
    %102 = arith.extui %101 : i1 to i32
    %c0_i32_83 = arith.constant 0 : i32
    %103 = arith.cmpi ne, %102, %c0_i32_83 : i32
    scf.if %103 {
      %c0_86 = arith.constant 0 : index
      %c0_87 = arith.constant 0 : index
      %107 = vector.load %arg10[%c0_86, %c0_87] : memref<32x128xf32, #tpu.memory_space<vmem>>, vector<32x128xf32>
      %108 = arith.addf %107, %97 : vector<32x128xf32>
      %c0_88 = arith.constant 0 : index
      %c0_89 = arith.constant 0 : index
      %109 = vector.load %arg10[%c0_88, %c0_89] : memref<32x128xf32, #tpu.memory_space<vmem>>, vector<32x128xf32>
      tpu.vector_store %arg10[%c0_88, %c0_89], %108 {strides = array<i32>} : memref<32x128xf32, #tpu.memory_space<vmem>>, vector<32x128xf32>,
    } else {
    }
    %c0_i32_84 = arith.constant 0 : i32
    %104 = arith.cmpi eq, %arg3, %c0_i32_84 : i32
    %105 = arith.extui %104 : i1 to i32
    %c0_i32_85 = arith.constant 0 : i32
    %106 = arith.cmpi ne, %105, %c0_i32_85 : i32
    scf.if %106 {
      %c0_86 = arith.constant 0 : index
      %c0_87 = arith.constant 0 : index
      %107 = vector.load %arg10[%c0_86, %c0_87] : memref<32x128xf32, #tpu.memory_space<vmem>>, vector<32x128xf32>
      %c0_88 = arith.constant 0 : index
      %c0_89 = arith.constant 0 : index
      %108 = vector.load %arg8[%c0_88, %c0_89] : memref<1x128xf32, #tpu.memory_space<vmem>>, vector<1x128xf32>
      %109 = vector.broadcast %108 : vector<1x128xf32> to vector<32x128xf32>
      %110 = arith.addf %107, %109 : vector<32x128xf32>
      %cst_90 = arith.constant 0.000000e+00 : f32
      %111 = vector.broadcast %cst_90 : f32 to vector<32x128xf32>
      %112 = arith.maximumf %110, %111 : vector<32x128xf32>
      %113 = vector.shape_cast %112 : vector<32x128xf32> to vector<1x32x128xf32>
      %c0_91 = arith.constant 0 : index
      %c0_92 = arith.constant 0 : index
      %c0_93 = arith.constant 0 : index
      %114 = vector.load %arg9[%c0_91, %c0_92, %c0_93] : memref<1x32x128xf32, #tpu.memory_space<vmem>>, vector<1x32x128xf32>
      tpu.vector_store %arg9[%c0_91, %c0_92, %c0_93], %113 {strides = array<i32>} : memref<1x32x128xf32, #tpu.memory_space<vmem>>, vector<1x32x128xf32>,
    } else {
    }
    return
  }
  func.func @transform_0(%arg0: i32, %arg1: i32, %arg2: i32, %arg3: i32) -> (i32, i32, i32, i32) {
    %c0_i32 = arith.constant 0 : i32
    %0 = arith.addi %arg1, %c0_i32 : i32
    %c0_i32_0 = arith.constant 0 : i32
    %c0_i32_1 = arith.constant 0 : i32
    return %arg0, %0, %c0_i32_0, %arg3 : i32, i32, i32, i32
  }
  func.func @transform_1(%arg0: i32, %arg1: i32, %arg2: i32, %arg3: i32) -> (i32, i32, i32, i32) {
    %c1_i32 = arith.constant 1 : i32
    %0 = arith.addi %arg1, %c1_i32 : i32
    %c0_i32 = arith.constant 0 : i32
    %c0_i32_0 = arith.constant 0 : i32
    return %arg0, %0, %c0_i32, %arg3 : i32, i32, i32, i32
  }
  func.func @transform_2(%arg0: i32, %arg1: i32, %arg2: i32, %arg3: i32) -> (i32, i32, i32, i32) {
    %c2_i32 = arith.constant 2 : i32
    %0 = arith.addi %arg1, %c2_i32 : i32
    %c0_i32 = arith.constant 0 : i32
    %c0_i32_0 = arith.constant 0 : i32
    return %arg0, %0, %c0_i32, %arg3 : i32, i32, i32, i32
  }
  func.func @transform_3(%arg0: i32, %arg1: i32, %arg2: i32, %arg3: i32) -> (i32, i32, i32) {
    %c0_i32 = arith.constant 0 : i32
    %c0_i32_0 = arith.constant 0 : i32
    %c0_i32_1 = arith.constant 0 : i32
    return %c0_i32, %c0_i32_0, %arg2 : i32, i32, i32
  }
  func.func @transform_4(%arg0: i32, %arg1: i32, %arg2: i32, %arg3: i32) -> (i32, i32) {
    %c0_i32 = arith.constant 0 : i32
    %c0_i32_0 = arith.constant 0 : i32
    return %c0_i32, %arg2 : i32, i32
  }
  func.func @transform_5(%arg0: i32, %arg1: i32, %arg2: i32, %arg3: i32) -> (i32, i32, i32) {
    %c0_i32 = arith.constant 0 : i32
    return %arg0, %arg1, %arg2 : i32, i32, i32
  }
}

</mosaic_0001>

<llo_original>
// kernel: tpu_custom_call.1
$region0: #{tpu_custom_call.1}
  #allocation0 [shape = 'u32[]', space=smem, size = 0x4, offset = 0x4, fixed_abs, tag = 'smem constant byte address 0x4 - core index']
  #allocation1 [shape = 'u32[144,128]{1,0:T(1,128)}', space=vmem, size = 0x12000, scoped, tag = 'internal scratch']
  #allocation2 [shape = 'f32[32,128]{1,0:T(8,128)}', space=vmem, size = 0x4000, scoped, tag = 'scratch operand']
  %s0 = inlined_call_operand.vmem [shape: bf16[2,20,24,4], index: 0, kind: input, shape index: {}]
  %s1 = inlined_call_operand.vmem [shape: bf16[2,20,24,4], index: 1, kind: input, shape index: {}]
  %s2 = inlined_call_operand.vmem [shape: bf16[2,20,24,4], index: 2, kind: input, shape index: {}]
  %s3 = inlined_call_operand.vmem [shape: bf16[9,4,128], index: 3, kind: input, shape index: {}]
  %s4 = inlined_call_operand.vmem [shape: f32[1,128], index: 4, kind: input, shape index: {}]
  %s5 = inlined_call_operand.hbm [shape: f32[2,256,128], index: 5, kind: output, shape index: {}]
  %s6 = sld [smem:[#allocation0]]
  $region65: #{tpu_custom_call.1} parent=0
    _
  %s8 = ssub.s32 1, %s6
  %s9 = scalar_select 0, %s8, %s6
  $region1: #{tpu_custom_call.1} parent=0
    #allocation3 [shape = 'u8[32768]{0}', space=vmem, size = 0x8000, scoped, tag = 'output window, operand 0']
    #allocation4 [shape = 's32[2]{0}', space=sflag, size = 0x8, scoped, tag = 'scoped memory for tpu_custom_call.1']
    %10 = vsyncpa [#allocation4], 0
    %s11 = scalar_lea.sflag [#allocation4], 1
    %12 = vsyncpa %s11, 0
    loop: start=0, step=1, limit=18
    $region2: #{tpu_custom_call.1} parent=1 // loop_pre_header
      _
    $region3: #{tpu_custom_call.1} parent=1 // loop_header
      %s14 = sphi 0, %s18
      %p15 = scmp.ge.s32.totalorder %s14, 18
      %s21 = sphi 0, %s47
      %s22 = sphi 0, %s43
      %s23 = sphi 0, %s39
      %s24 = sphi 0, %s35
      %s25 = sphi 0, %s21
      %s26 = sphi 0, %s22
      %s27 = sphi 0, %s23
      %s28 = sphi 0, %s24
      %s29 = sphi 0, %s25
      %s30 = sphi 0, %s26
      %s31 = sphi 0, %s27
      %s32 = sphi 0, %s28
      %s54 = sphi 0, %s56
      %s57 = sphi 0, %s54
      %s58 = sphi 0, %s57
      %s74 = sphi 0, %s58
      %s86 = sphi 0, %s88
      %s89 = sphi 0, %s86
      %s90 = sphi 0, %s89
      %s106 = sphi 0, %s90
      %s118 = sphi 0, %s120
      %s121 = sphi 0, %s118
      %s122 = sphi 0, %s121
      %s138 = sphi 0, %s122
      %s144 = sphi 0, %s146
      %s147 = sphi 0, %s144
      %s148 = sphi 0, %s147
      %s164 = sphi 0, %s148
      %s170 = sphi 0, %s172
      %s173 = sphi 0, %s170
      %s174 = sphi 0, %s173
      %s190 = sphi 0, %s174
      %s200 = sphi 0, %s202
      %s203 = sphi 0, %s200
      %s204 = sphi 0, %s203
      %s220 = sphi 0, %s204
    $region4: #{tpu_custom_call.1} parent=1 // loop_header_branch
      %17 = sbr.rel (%p15) target = $region8
    $region5: #{tpu_custom_call.1} parent=1 // loop_body
      %s19 = ssub.s32 %s14, 1
      %s20 = ssub.s32 %s14, 2
      %s33 = sadd.s32 1, %s24
      %p34 = scmp.ge.s32.totalorder %s33, 1
      %s35 = scalar_select %p34, 0, %s33
      %s36 = sadd.s32 1, %s23
      %s37 = scalar_select %p34, %s36, %s23
      %p38 = scmp.ge.s32.totalorder %s37, 1
      %s39 = scalar_select %p38, 0, %s37
      %s40 = sadd.s32 1, %s22
      %s41 = scalar_select %p38, %s40, %s22
      %p42 = scmp.ge.s32.totalorder %s41, 8
      %s43 = scalar_select %p42, 0, %s41
      %s44 = sadd.s32 1, %s21
      %s45 = scalar_select %p42, %s44, %s21
      %p46 = scmp.ge.s32.totalorder %s45, 2
      %s47 = scalar_select %p46, 0, %s45
      %s48 = ssub.s32 %s21, %s47
      %s49 = ssub.s32 %s22, %s43
      %s50 = sor.u32 %s48, %s49
      %s51 = ssub.s32 %s24, %s35
      %s52 = sor.u32 %s50, %s51
      %p53 = scmp.eq.s32.totalorder %s52, 0
      %s55 = sadd.s32 %s54, 1
      %s56 = scalar_select %p53, %s54, %s55
      %p59 = pneg %p53
      %p60 = scmp.eq.s32.totalorder %s14, 15
      %p61 = por %p59, %p60
      %p62 = scmp.ne.s32.totalorder %s54, %s57
      %p63 = scmp.eq.s32.totalorder %s14, 0
      %p64 = por %p62, %p63
      %p65 = scmp.ne.s32.totalorder %s54, %s57
      %p66 = scmp.eq.s32.totalorder %s19, 15
      %p67 = por %p65, %p66
      %p68 = scmp.ne.s32.totalorder %s57, %s58
      %p69 = scmp.eq.s32.totalorder %s19, 0
      %p70 = por %p68, %p69
      %p71 = scmp.ne.s32.totalorder %s57, %s58
      %p72 = scmp.eq.s32.totalorder %s20, 15
      %p73 = por %p71, %p72
      %p75 = scmp.ne.s32.totalorder %s58, %s74
      %p76 = scmp.eq.s32.totalorder %s20, 0
      %p77 = por %p75, %p76
      %s78 = sadd.s32 %s22, 1
      %s79 = sadd.s32 %s43, 1
      %s80 = ssub.s32 %s21, %s47
      %s81 = ssub.s32 %s78, %s79
      %s82 = sor.u32 %s80, %s81
      %s83 = ssub.s32 %s24, %s35
      %s84 = sor.u32 %s82, %s83
      %p85 = scmp.eq.s32.totalorder %s84, 0
      %s87 = sadd.s32 %s86, 1
      %s88 = scalar_select %p85, %s86, %s87
      %p91 = pneg %p85
      %p92 = scmp.eq.s32.totalorder %s14, 15
      %p93 = por %p91, %p92
      %p94 = scmp.ne.s32.totalorder %s86, %s89
      %p95 = scmp.eq.s32.totalorder %s14, 0
      %p96 = por %p94, %p95
      %p97 = scmp.ne.s32.totalorder %s86, %s89
      %p98 = scmp.eq.s32.totalorder %s19, 15
      %p99 = por %p97, %p98
      %p100 = scmp.ne.s32.totalorder %s89, %s90
      %p101 = scmp.eq.s32.totalorder %s19, 0
      %p102 = por %p100, %p101
      %p103 = scmp.ne.s32.totalorder %s89, %s90
      %p104 = scmp.eq.s32.totalorder %s20, 15
      %p105 = por %p103, %p104
      %p107 = scmp.ne.s32.totalorder %s90, %s106
      %p108 = scmp.eq.s32.totalorder %s20, 0
      %p109 = por %p107, %p108
      %s110 = sadd.s32 %s22, 2
      %s111 = sadd.s32 %s43, 2
      %s112 = ssub.s32 %s21, %s47
      %s113 = ssub.s32 %s110, %s111
      %s114 = sor.u32 %s112, %s113
      %s115 = ssub.s32 %s24, %s35
      %s116 = sor.u32 %s114, %s115
      %p117 = scmp.eq.s32.totalorder %s116, 0
      %s119 = sadd.s32 %s118, 1
      %s120 = scalar_select %p117, %s118, %s119
      %p123 = pneg %p117
      %p124 = scmp.eq.s32.totalorder %s14, 15
      %p125 = por %p123, %p124
      %p126 = scmp.ne.s32.totalorder %s118, %s121
      %p127 = scmp.eq.s32.totalorder %s14, 0
      %p128 = por %p126, %p127
      %p129 = scmp.ne.s32.totalorder %s118, %s121
      %p130 = scmp.eq.s32.totalorder %s19, 15
      %p131 = por %p129, %p130
      %p132 = scmp.ne.s32.totalorder %s121, %s122
      %p133 = scmp.eq.s32.totalorder %s19, 0
      %p134 = por %p132, %p133
      %p135 = scmp.ne.s32.totalorder %s121, %s122
      %p136 = scmp.eq.s32.totalorder %s20, 15
      %p137 = por %p135, %p136
      %p139 = scmp.ne.s32.totalorder %s122, %s138
      %p140 = scmp.eq.s32.totalorder %s20, 0
      %p141 = por %p139, %p140
      %s142 = ssub.s32 %s23, %s39
      %p143 = scmp.eq.s32.totalorder %s142, 0
      %s145 = sadd.s32 %s144, 1
      %s146 = scalar_select %p143, %s144, %s145
      %p149 = pneg %p143
      %p150 = scmp.eq.s32.totalorder %s14, 15
      %p151 = por %p149, %p150
      %p152 = scmp.ne.s32.totalorder %s144, %s147
      %p153 = scmp.eq.s32.totalorder %s14, 0
      %p154 = por %p152, %p153
      %p155 = scmp.ne.s32.totalorder %s144, %s147
      %p156 = scmp.eq.s32.totalorder %s19, 15
      %p157 = por %p155, %p156
      %p158 = scmp.ne.s32.totalorder %s147, %s148
      %p159 = scmp.eq.s32.totalorder %s19, 0
      %p160 = por %p158, %p159
      %p161 = scmp.ne.s32.totalorder %s147, %s148
      %p162 = scmp.eq.s32.totalorder %s20, 15
      %p163 = por %p161, %p162
      %p165 = scmp.ne.s32.totalorder %s148, %s164
      %p166 = scmp.eq.s32.totalorder %s20, 0
      %p167 = por %p165, %p166
      %s168 = ssub.s32 %s23, %s39
      %p169 = scmp.eq.s32.totalorder %s168, 0
      %s171 = sadd.s32 %s170, 1
      %s172 = scalar_select %p169, %s170, %s171
      %p175 = pneg %p169
      %p176 = scmp.eq.s32.totalorder %s14, 15
      %p177 = por %p175, %p176
      %p178 = scmp.ne.s32.totalorder %s170, %s173
      %p179 = scmp.eq.s32.totalorder %s14, 0
      %p180 = por %p178, %p179
      %p181 = scmp.ne.s32.totalorder %s170, %s173
      %p182 = scmp.eq.s32.totalorder %s19, 15
      %p183 = por %p181, %p182
      %p184 = scmp.ne.s32.totalorder %s173, %s174
      %p185 = scmp.eq.s32.totalorder %s19, 0
      %p186 = por %p184, %p185
      %p187 = scmp.ne.s32.totalorder %s173, %s174
      %p188 = scmp.eq.s32.totalorder %s20, 15
      %p189 = por %p187, %p188
      %p191 = scmp.ne.s32.totalorder %s174, %s190
      %p192 = scmp.eq.s32.totalorder %s20, 0
      %p193 = por %p191, %p192
      %s194 = ssub.s32 %s21, %s47
      %s195 = ssub.s32 %s22, %s43
      %s196 = sor.u32 %s194, %s195
      %s197 = ssub.s32 %s23, %s39
      %s198 = sor.u32 %s196, %s197
      %p199 = scmp.eq.s32.totalorder %s198, 0
      %s201 = sadd.s32 %s200, 1
      %s202 = scalar_select %p199, %s200, %s201
      %p205 = pneg %p199
      %p206 = scmp.eq.s32.totalorder %s14, 15
      %p207 = por %p205, %p206
      %p208 = scmp.ne.s32.totalorder %s200, %s203
      %p209 = scmp.eq.s32.totalorder %s14, 0
      %p210 = por %p208, %p209
      %p211 = scmp.ne.s32.totalorder %s200, %s203
      %p212 = scmp.eq.s32.totalorder %s19, 15
      %p213 = por %p211, %p212
      %p214 = scmp.ne.s32.totalorder %s203, %s204
      %p215 = scmp.eq.s32.totalorder %s19, 0
      %p216 = por %p214, %p215
      %p217 = scmp.ne.s32.totalorder %s203, %s204
      %p218 = scmp.eq.s32.totalorder %s20, 15
      %p219 = por %p217, %p218
      %p221 = scmp.ne.s32.totalorder %s204, %s220
      %p222 = scmp.eq.s32.totalorder %s20, 0
      %p223 = por %p221, %p222
      %p224 = scmp.le.s32.totalorder 1, %s14
      %p225 = scmp.lt.s32.totalorder %s14, 17
      %p226 = pnand %p224, %p225
      %p227 = pneg %p226
      // Predicated region
      $region9: #{tpu_custom_call.1} parent=5 // pred_check
        _
      $region10: #{tpu_custom_call.1} parent=5 // pred_check_branch
        %229 = sbr.rel (%p226) target = $region12
      $region11: #{tpu_custom_call.1} parent=5 // pred_region
        %s230 = ssub.s32 %s14, 1
        // Predicated region
        $region13: #{tpu_custom_call.1} parent=11 // pred_check
          %p231 = pneg %p160
        $region14: #{tpu_custom_call.1} parent=11 // pred_check_branch
          %233 = sbr.rel (%p231) target = $region16
        $region15: #{tpu_custom_call.1} parent=11 // pred_region
          %p234 = scmp.lt.s32.totalorder %s27, 0
          %s235 = scalar_select %p234, %s27, 0
          %s236 = smul.addr %s235, 2
          %s237 = scalar_lea.vmem %s3, %s236
        $region16: #{tpu_custom_call.1} parent=11 // pred_fallthru
          _
        // Predicated region
        $region17: #{tpu_custom_call.1} parent=11 // pred_check
          %p238 = pneg %p186
        $region18: #{tpu_custom_call.1} parent=11 // pred_check_branch
          %240 = sbr.rel (%p238) target = $region20
        $region19: #{tpu_custom_call.1} parent=11 // pred_region
          %p241 = scmp.lt.s32.totalorder %s27, 0
          %s242 = scalar_select %p241, %s27, 0
          %s243 = scalar_lea.vmem %s4, %s242
        $region20: #{tpu_custom_call.1} parent=11 // pred_fallthru
          _
      $region12: #{tpu_custom_call.1} parent=5 // pred_fallthru
        _
      %p244 = scmp.lt.s32.totalorder %s14, 16
      // Predicated region
      $region21: #{tpu_custom_call.1} parent=5 // pred_check
        %p245 = pneg %p244
      $region22: #{tpu_custom_call.1} parent=5 // pred_check_branch
        %247 = sbr.rel (%p245) target = $region24
      $region23: #{tpu_custom_call.1} parent=5 // pred_region
        // Predicated region
        $region25: #{tpu_custom_call.1} parent=23 // pred_check
          %p248 = pneg %p64
        $region26: #{tpu_custom_call.1} parent=23 // pred_check_branch
          %250 = sbr.rel (%p248) target = $region28
        $region27: #{tpu_custom_call.1} parent=23 // pred_region
          %s251 = smul.u32 2, %s22
          %p252 = scmp.lt.s32.totalorder %s21, 1
          %s253 = scalar_select %p252, %s21, 1
          %p254 = scmp.lt.s32.totalorder %s251, 19
          %s255 = scalar_select %p254, %s251, 19
          %p256 = scmp.lt.s32.totalorder %s24, 0
          %s257 = scalar_select %p256, %s24, 0
          %s258 = smul.addr %s255, 3
          %s259 = sadd.s32 %s257, %s258
          %s260 = smul.addr %s253, 60
          %s261 = sadd.s32 %s259, %s260
          %s262 = smul.addr %s261, 4
          %s263 = scalar_lea.vmem %s0, %s262
          %s264 = smul.u32 2, %s22
        $region28: #{tpu_custom_call.1} parent=23 // pred_fallthru
          _
        // Predicated region
        $region29: #{tpu_custom_call.1} parent=23 // pred_check
          %p265 = pneg %p96
        $region30: #{tpu_custom_call.1} parent=23 // pred_check_branch
          %267 = sbr.rel (%p265) target = $region32
        $region31: #{tpu_custom_call.1} parent=23 // pred_region
          %s268 = sadd.s32 %s22, 1
          %s269 = smul.u32 2, %s268
          %p270 = scmp.lt.s32.totalorder %s21, 1
          %s271 = scalar_select %p270, %s21, 1
          %p272 = scmp.lt.s32.totalorder %s269, 19
          %s273 = scalar_select %p272, %s269, 19
          %p274 = scmp.lt.s32.totalorder %s24, 0
          %s275 = scalar_select %p274, %s24, 0
          %s276 = smul.addr %s273, 3
          %s277 = sadd.s32 %s275, %s276
          %s278 = smul.addr %s271, 60
          %s279 = sadd.s32 %s277, %s278
          %s280 = smul.addr %s279, 4
          %s281 = scalar_lea.vmem %s1, %s280
          %s282 = sadd.s32 %s22, 1
          %s283 = smul.u32 2, %s282
        $region32: #{tpu_custom_call.1} parent=23 // pred_fallthru
          _
        // Predicated region
        $region33: #{tpu_custom_call.1} parent=23 // pred_check
          %p284 = pneg %p128
        $region34: #{tpu_custom_call.1} parent=23 // pred_check_branch
          %286 = sbr.rel (%p284) target = $region36
        $region35: #{tpu_custom_call.1} parent=23 // pred_region
          %s287 = sadd.s32 %s22, 2
          %s288 = smul.u32 2, %s287
          %p289 = scmp.lt.s32.totalorder %s21, 1
          %s290 = scalar_select %p289, %s21, 1
          %p291 = scmp.lt.s32.totalorder %s288, 19
          %s292 = scalar_select %p291, %s288, 19
          %p293 = scmp.lt.s32.totalorder %s24, 0
          %s294 = scalar_select %p293, %s24, 0
          %s295 = smul.addr %s292, 3
          %s296 = sadd.s32 %s294, %s295
          %s297 = smul.addr %s290, 60
          %s298 = sadd.s32 %s296, %s297
          %s299 = smul.addr %s298, 4
          %s300 = scalar_lea.vmem %s2, %s299
          %s301 = sadd.s32 %s22, 2
          %s302 = smul.u32 2, %s301
        $region36: #{tpu_custom_call.1} parent=23 // pred_fallthru
          _
      $region24: #{tpu_custom_call.1} parent=5 // pred_fallthru
        _
      %p303 = scmp.le.s32.totalorder 1, %s14
      %p304 = scmp.lt.s32.totalorder %s14, 17
      %p305 = pnand %p303, %p304
      %p306 = pneg %p305
      // Predicated region
      $region37: #{tpu_custom_call.1} parent=5 // pred_check
        _
      $region38: #{tpu_custom_call.1} parent=5 // pred_check_branch
        %308 = sbr.rel (%p305) target = $region40
      $region39: #{tpu_custom_call.1} parent=5 // pred_region
        %s309 = ssub.s32 %s14, 1
        %s310 = smul.u32 2, %s26
        %p311 = scmp.lt.s32.totalorder %s25, 1
        %s312 = scalar_select %p311, %s25, 1
        %p313 = scmp.lt.s32.totalorder %s310, 19
        %s314 = scalar_select %p313, %s310, 19
        %p315 = scmp.lt.s32.totalorder %s28, 0
        %s316 = scalar_select %p315, %s28, 0
        %s317 = smul.addr %s314, 3
        %s318 = sadd.s32 %s316, %s317
        %s319 = smul.addr %s312, 60
        %s320 = sadd.s32 %s318, %s319
        %s321 = smul.addr %s320, 4
        %s322 = scalar_lea.vmem %s0, %s321
        %p323 = pneg %p70
        %p324 = pneg %p67
        %s325 = sadd.s32 %s26, 1
        %s326 = smul.u32 2, %s325
        %p327 = scmp.lt.s32.totalorder %s25, 1
        %s328 = scalar_select %p327, %s25, 1
        %p329 = scmp.lt.s32.totalorder %s326, 19
        %s330 = scalar_select %p329, %s326, 19
        %p331 = scmp.lt.s32.totalorder %s28, 0
        %s332 = scalar_select %p331, %s28, 0
        %s333 = smul.addr %s330, 3
        %s334 = sadd.s32 %s332, %s333
        %s335 = smul.addr %s328, 60
        %s336 = sadd.s32 %s334, %s335
        %s337 = smul.addr %s336, 4
        %s338 = scalar_lea.vmem %s1, %s337
        %p339 = pneg %p102
        %p340 = pneg %p99
        %s341 = sadd.s32 %s26, 2
        %s342 = smul.u32 2, %s341
        %p343 = scmp.lt.s32.totalorder %s25, 1
        %s344 = scalar_select %p343, %s25, 1
        %p345 = scmp.lt.s32.totalorder %s342, 19
        %s346 = scalar_select %p345, %s342, 19
        %p347 = scmp.lt.s32.totalorder %s28, 0
        %s348 = scalar_select %p347, %s28, 0
        %s349 = smul.addr %s346, 3
        %s350 = sadd.s32 %s348, %s349
        %s351 = smul.addr %s344, 60
        %s352 = sadd.s32 %s350, %s351
        %s353 = smul.addr %s352, 4
        %s354 = scalar_lea.vmem %s2, %s353
        %p355 = pneg %p134
        %p356 = pneg %p131
        %p357 = scmp.lt.s32.totalorder %s27, 0
        %s358 = scalar_select %p357, %s27, 0
        %s359 = smul.addr %s358, 2
        %s360 = scalar_lea.vmem %s3, %s359
        %p361 = pneg %p160
        %p362 = pneg %p157
        %p363 = scmp.lt.s32.totalorder %s27, 0
        %s364 = scalar_select %p363, %s27, 0
        %s365 = scalar_lea.vmem %s4, %s364
        %p366 = pneg %p186
        %p367 = pneg %p183
        %p368 = pneg %p216
        %p369 = pneg %p213
        %s370 = sand.u32 %s203, 1
        %s371 = scalar_lea.sflag [#allocation4], %s370
        %s372 = sand.u32 %s203, 1
        %s373 = smul.addr %s372, 32
        %s374 = scalar_lea.vmem [#allocation3], %s373
        %s375 = smul.u32 2, %s26
        %p376 = scmp.lt.s32.totalorder %s25, 1
        %s377 = scalar_select %p376, %s25, 1
        %p378 = scmp.lt.s32.totalorder %s375, 19
        %s379 = scalar_select %p378, %s375, 19
        %p380 = scmp.lt.s32.totalorder %s28, 0
        %s381 = scalar_select %p380, %s28, 0
        %s382 = smul.addr %s379, 3
        %s383 = sadd.s32 %s381, %s382
        %s384 = smul.addr %s377, 60
        %s385 = sadd.s32 %s383, %s384
        %s386 = smul.addr %s385, 4
        %s387 = scalar_lea.vmem %s0, %s386
        %s388 = smul.u32 2, %s26
        %s389 = sadd.s32 %s26, 1
        %s390 = smul.u32 2, %s389
        %p391 = scmp.lt.s32.totalorder %s25, 1
        %s392 = scalar_select %p391, %s25, 1
        %p393 = scmp.lt.s32.totalorder %s390, 19
        %s394 = scalar_select %p393, %s390, 19
        %p395 = scmp.lt.s32.totalorder %s28, 0
        %s396 = scalar_select %p395, %s28, 0
        %s397 = smul.addr %s394, 3
        %s398 = sadd.s32 %s396, %s397
        %s399 = smul.addr %s392, 60
        %s400 = sadd.s32 %s398, %s399
        %s401 = smul.addr %s400, 4
        %s402 = scalar_lea.vmem %s1, %s401
        %s403 = sadd.s32 %s26, 1
        %s404 = smul.u32 2, %s403
        %s405 = sadd.s32 %s26, 2
        %s406 = smul.u32 2, %s405
        %p407 = scmp.lt.s32.totalorder %s25, 1
        %s408 = scalar_select %p407, %s25, 1
        %p409 = scmp.lt.s32.totalorder %s406, 19
        %s410 = scalar_select %p409, %s406, 19
        %p411 = scmp.lt.s32.totalorder %s28, 0
        %s412 = scalar_select %p411, %s28, 0
        %s413 = smul.addr %s410, 3
        %s414 = sadd.s32 %s412, %s413
        %s415 = smul.addr %s408, 60
        %s416 = sadd.s32 %s414, %s415
        %s417 = smul.addr %s416, 4
        %s418 = scalar_lea.vmem %s2, %s417
        %s419 = sadd.s32 %s26, 2
        %s420 = smul.u32 2, %s419
        %p421 = scmp.lt.s32.totalorder %s27, 0
        %s422 = scalar_select %p421, %s27, 0
        %s423 = smul.addr %s422, 2
        %s424 = scalar_lea.vmem %s3, %s423
        %p425 = scmp.lt.s32.totalorder %s27, 0
        %s426 = scalar_select %p425, %s27, 0
        %s427 = scalar_lea.vmem %s4, %s426
        %s428 = smul.u32 4, %s26
        %v430 = vld [vmem:[%s387] sm:$0xf]
        %v431 = vld [vmem:[%s387 + $0x4] sm:$0xf]
        %v432 = vld [vmem:[%s387 + $0xc] sm:$0xf]
        %v433 = vld [vmem:[%s387 + $0x10] sm:$0xf]
        %s434 = smul.u32 %s28, 9
        %s435 = smul.addr %s434, 2
        %s436 = scalar_lea.vmem %s424, %s435
        %v437 = vld [vmem:[%s436] sm:$0x3]
        %v438 = vld [vmem:[%s387] sm:$0xe]
        %v439 = vld [vmem:[%s387 + $0x8] sm:$0x1]
        %v440 = vld [vmem:[%s387 + $0xc] sm:$0xe]
        %v441 = vld [vmem:[%s387 + $0x14] sm:$0x1]
        %s442 = sadd.s32 %s434, 1
        %s443 = smul.addr %s442, 2
        %s444 = scalar_lea.vmem %s424, %s443
        %v445 = vld [vmem:[%s444] sm:$0x3]
        %vm452 = vcmask 1042432
        %vm453 = vcmask 1046532
        %vm454 = vmor %vm452, %vm453
        %v455 = vrot.slane %v438, 5
        %v456 = vrot.slane %v455, 4
        %v457 = vrot.slane %v431, 5
        %v458 = vsel %vm454, %v456, %v457
        %v459 = vrot.slane %v457, 4
        %v460 = vrot.slane %v439, 5
        %v461 = vsel %vm454, %v459, %v460
        %v462 = vrot.slane %v440, 5
        %v463 = vrot.slane %v462, 4
        %v464 = vrot.slane %v433, 5
        %v465 = vsel %vm454, %v463, %v464
        %v466 = vrot.slane %v464, 4
        %v467 = vrot.slane %v441, 5
        %v468 = vsel %vm454, %v466, %v467
        %v469 = vunpack.c.l.b16 %v458
        %v470 = vunpack.c.l.b16 %v461
        %v471 = vunpack.c.l.b16 %v465
        %v472 = vunpack.c.l.b16 %v468
        %v473 = vpack.c.b16 %v470, %v469
        %v474 = vpack.c.b16 %v472, %v471
        %vm475 = vcmask 31744
        %v477 = vsel %vm475, %v473, 0
        %v480 = vsel %vm475, %v474, 0
        %vm482 = vcmask 1041408
        %v484 = vsel %vm482, %v445, 0
        %486 = vmatprep.subr.bf16.mxu0 0
        %487 = vmatpush1.bf16.msra.mxu0 0
        %488 = vmatprep.subr.bf16.mxu0 0
        %489 = vmatpush1.bf16.msra.mxu0 0
        %490 = vmatprep.subr.bf16.mxu0 0
        %491 = vmatpush1.bf16.msra.mxu0 0
        %492 = vmatprep.subr.bf16.mxu0 0
        %493 = vmatpush1.bf16.msra.mxu0 0
        %494 = vmatprep.subr.bf16.mxu0 0
        %495 = vmatpush1.bf16.msra.mxu0 0
        %496 = vmatprep.subr.bf16.mxu0 0
        %497 = vmatpush1.bf16.msra.mxu0 0
        %498 = vmatprep.subr.bf16.mxu0 0
        %499 = vmatpush1.bf16.msra.mxu0 0
        %500 = vmatprep.subr.bf16.mxu0 0
        %501 = vmatpush1.bf16.msra.mxu0 %v484
        %502 = vmatprep.subr.bf16.mxu0 0
        %503 = vmatpush2.bf16.msra.mxu0 0
        %504 = vmatprep.subr.bf16.mxu0 0
        %505 = vmatpush2.bf16.msra.mxu0 0
        %506 = vmatprep.subr.bf16.mxu0 0
        %507 = vmatpush2.bf16.msra.mxu0 0
        %508 = vmatprep.subr.bf16.mxu0 0
        %509 = vmatpush2.bf16.msra.mxu0 0
        %510 = vmatprep.subr.bf16.mxu0 0
        %511 = vmatpush2.bf16.msra.mxu0 0
        %512 = vmatprep.subr.bf16.mxu0 0
        %513 = vmatpush2.bf16.msra.mxu0 0
        %514 = vmatprep.subr.bf16.mxu0 0
        %515 = vmatpush2.bf16.msra.mxu0 0
        %516 = vmatprep.subr.bf16.mxu0 0
        %517 = vmatpush2.bf16.msra.mxu0 0
        %518 = vmatprep.mubr.bf16.mxu0 0
        %519 = vmatmul.mubr.bf16.gmra.mxu0 %v477
        %v520 = vpop.f32.mrf.mxu0
        %v521 = vadd.f32 0.0, %v520
        %v522 = vpop.f32.mrf.mxu0
        %v523 = vpop.f32.mrf.mxu0
        %v524 = vadd.f32 0.0, %v523
        %v525 = vpop.f32.mrf.mxu0
        %526 = vmatprep.mubr.bf16.mxu0 0
        %527 = vmatmul.mubr.bf16.gmra.mxu0 %v480
        %v528 = vpop.f32.mrf.mxu0
        %v529 = vadd.f32 0.0, %v528
        %v530 = vpop.f32.mrf.mxu0
        %v531 = vpop.f32.mrf.mxu0
        %v532 = vadd.f32 0.0, %v531
        %v533 = vpop.f32.mrf.mxu0
        %534 = vdwg.mxu0
        %v537 = vunpack.c.l.b16 %v430
        %v538 = vunpack.c.l.b16 %v431
        %v539 = vunpack.c.l.b16 %v432
        %v540 = vunpack.c.l.b16 %v433
        %v541 = vpack.c.b16 %v538, %v537
        %v542 = vpack.c.b16 %v540, %v539
        %v544 = vsel %vm475, %v541, 0
        %v547 = vsel %vm475, %v542, 0
        %v550 = vsel %vm482, %v437, 0
        %552 = vmatprep.subr.bf16.mxu0 0
        %553 = vmatpush1.bf16.msra.mxu0 0
        %554 = vmatprep.subr.bf16.mxu0 0
        %555 = vmatpush1.bf16.msra.mxu0 0
        %556 = vmatprep.subr.bf16.mxu0 0
        %557 = vmatpush1.bf16.msra.mxu0 0
        %558 = vmatprep.subr.bf16.mxu0 0
        %559 = vmatpush1.bf16.msra.mxu0 0
        %560 = vmatprep.subr.bf16.mxu0 0
        %561 = vmatpush1.bf16.msra.mxu0 0
        %562 = vmatprep.subr.bf16.mxu0 0
        %563 = vmatpush1.bf16.msra.mxu0 0
        %564 = vmatprep.subr.bf16.mxu0 0
        %565 = vmatpush1.bf16.msra.mxu0 0
        %566 = vmatprep.subr.bf16.mxu0 0
        %567 = vmatpush1.bf16.msra.mxu0 %v550
        %568 = vmatprep.subr.bf16.mxu0 0
        %569 = vmatpush2.bf16.msra.mxu0 0
        %570 = vmatprep.subr.bf16.mxu0 0
        %571 = vmatpush2.bf16.msra.mxu0 0
        %572 = vmatprep.subr.bf16.mxu0 0
        %573 = vmatpush2.bf16.msra.mxu0 0
        %574 = vmatprep.subr.bf16.mxu0 0
        %575 = vmatpush2.bf16.msra.mxu0 0
        %576 = vmatprep.subr.bf16.mxu0 0
        %577 = vmatpush2.bf16.msra.mxu0 0
        %578 = vmatprep.subr.bf16.mxu0 0
        %579 = vmatpush2.bf16.msra.mxu0 0
        %580 = vmatprep.subr.bf16.mxu0 0
        %581 = vmatpush2.bf16.msra.mxu0 0
        %582 = vmatprep.subr.bf16.mxu0 0
        %583 = vmatpush2.bf16.msra.mxu0 0
        %584 = vmatprep.mubr.bf16.mxu0 0
        %585 = vmatmul.mubr.bf16.gmra.mxu0 %v544
        %v586 = vpop.f32.mrf.mxu0
        %v587 = vadd.f32 %v521, %v586
        %v588 = vpop.f32.mrf.mxu0
        %v589 = vpop.f32.mrf.mxu0
        %v590 = vadd.f32 %v524, %v589
        %v591 = vpop.f32.mrf.mxu0
        %592 = vmatprep.mubr.bf16.mxu0 0
        %593 = vmatmul.mubr.bf16.gmra.mxu0 %v547
        %v594 = vpop.f32.mrf.mxu0
        %v595 = vadd.f32 %v529, %v594
        %v596 = vpop.f32.mrf.mxu0
        %v597 = vpop.f32.mrf.mxu0
        %v598 = vadd.f32 %v532, %v597
        %v599 = vpop.f32.mrf.mxu0
        %600 = vdwg.mxu0
        %v601 = vld [vmem:[%s387] sm:$0xc]
        %v602 = vld [vmem:[%s387 + $0x8] sm:$0x3]
        %v603 = vld [vmem:[%s387 + $0xc] sm:$0xc]
        %v604 = vld [vmem:[%s387 + $0x14] sm:$0x3]
        %s605 = sadd.s32 %s434, 2
        %s606 = smul.addr %s605, 2
        %s607 = scalar_lea.vmem %s424, %s606
        %v608 = vld [vmem:[%s607] sm:$0x3]
        %vm613 = vcmask 1041408
        %vm614 = vcmask 1045508
        %vm615 = vmor %vm613, %vm614
        %v616 = vrot.slane %v601, 6
        %v617 = vrot.slane %v616, 4
        %v618 = vrot.slane %v431, 6
        %v619 = vsel %vm615, %v617, %v618
        %v620 = vrot.slane %v618, 4
        %v621 = vrot.slane %v602, 6
        %v622 = vsel %vm615, %v620, %v621
        %v623 = vrot.slane %v603, 6
        %v624 = vrot.slane %v623, 4
        %v625 = vrot.slane %v433, 6
        %v626 = vsel %vm615, %v624, %v625
        %v627 = vrot.slane %v625, 4
        %v628 = vrot.slane %v604, 6
        %v629 = vsel %vm615, %v627, %v628
        %v630 = vunpack.c.l.b16 %v619
        %v631 = vunpack.c.l.b16 %v622
        %v632 = vunpack.c.l.b16 %v626
        %v633 = vunpack.c.l.b16 %v629
        %v634 = vpack.c.b16 %v631, %v630
        %v635 = vpack.c.b16 %v633, %v632
        %v637 = vsel %vm475, %v634, 0
        %v640 = vsel %vm475, %v635, 0
        %v643 = vsel %vm482, %v608, 0
        %645 = vmatprep.subr.bf16.mxu0 0
        %646 = vmatpush1.bf16.msra.mxu0 0
        %647 = vmatprep.subr.bf16.mxu0 0
        %648 = vmatpush1.bf16.msra.mxu0 0
        %649 = vmatprep.subr.bf16.mxu0 0
        %650 = vmatpush1.bf16.msra.mxu0 0
        %651 = vmatprep.subr.bf16.mxu0 0
        %652 = vmatpush1.bf16.msra.mxu0 0
        %653 = vmatprep.subr.bf16.mxu0 0
        %654 = vmatpush1.bf16.msra.mxu0 0
        %655 = vmatprep.subr.bf16.mxu0 0
        %656 = vmatpush1.bf16.msra.mxu0 0
        %657 = vmatprep.subr.bf16.mxu0 0
        %658 = vmatpush1.bf16.msra.mxu0 0
        %659 = vmatprep.subr.bf16.mxu0 0
        %660 = vmatpush1.bf16.msra.mxu0 %v643
        %661 = vmatprep.subr.bf16.mxu0 0
        %662 = vmatpush2.bf16.msra.mxu0 0
        %663 = vmatprep.subr.bf16.mxu0 0
        %664 = vmatpush2.bf16.msra.mxu0 0
        %665 = vmatprep.subr.bf16.mxu0 0
        %666 = vmatpush2.bf16.msra.mxu0 0
        %667 = vmatprep.subr.bf16.mxu0 0
        %668 = vmatpush2.bf16.msra.mxu0 0
        %669 = vmatprep.subr.bf16.mxu0 0
        %670 = vmatpush2.bf16.msra.mxu0 0
        %671 = vmatprep.subr.bf16.mxu0 0
        %672 = vmatpush2.bf16.msra.mxu0 0
        %673 = vmatprep.subr.bf16.mxu0 0
        %674 = vmatpush2.bf16.msra.mxu0 0
        %675 = vmatprep.subr.bf16.mxu0 0
        %676 = vmatpush2.bf16.msra.mxu0 0
        %677 = vmatprep.mubr.bf16.mxu0 0
        %678 = vmatmul.mubr.bf16.gmra.mxu0 %v637
        %v679 = vpop.f32.mrf.mxu0
        %v680 = vadd.f32 0.0, %v679
        %v681 = vpop.f32.mrf.mxu0
        %v682 = vpop.f32.mrf.mxu0
        %v683 = vadd.f32 0.0, %v682
        %v684 = vpop.f32.mrf.mxu0
        %685 = vmatprep.mubr.bf16.mxu0 0
        %686 = vmatmul.mubr.bf16.gmra.mxu0 %v640
        %v687 = vpop.f32.mrf.mxu0
        %v688 = vadd.f32 0.0, %v687
        %v689 = vpop.f32.mrf.mxu0
        %v690 = vpop.f32.mrf.mxu0
        %v691 = vadd.f32 0.0, %v690
        %v692 = vpop.f32.mrf.mxu0
        %693 = vdwg.mxu0
        %v694 = vadd.f32 %v587, %v680
        %v695 = vadd.f32 %v590, %v683
        %v696 = vadd.f32 %v595, %v688
        %v697 = vadd.f32 %v598, %v691
        %v698 = vld [vmem:[%s402] sm:$0xf]
        %v699 = vld [vmem:[%s402 + $0x4] sm:$0xf]
        %v700 = vld [vmem:[%s402 + $0xc] sm:$0xf]
        %v701 = vld [vmem:[%s402 + $0x10] sm:$0xf]
        %s702 = sadd.s32 %s434, 3
        %s703 = smul.addr %s702, 2
        %s704 = scalar_lea.vmem %s424, %s703
        %v705 = vld [vmem:[%s704] sm:$0x3]
        %v710 = vunpack.c.l.b16 %v698
        %v711 = vunpack.c.l.b16 %v699
        %v712 = vunpack.c.l.b16 %v700
        %v713 = vunpack.c.l.b16 %v701
        %v714 = vpack.c.b16 %v711, %v710
        %v715 = vpack.c.b16 %v713, %v712
        %v717 = vsel %vm475, %v714, 0
        %v720 = vsel %vm475, %v715, 0
        %v723 = vsel %vm482, %v705, 0
        %725 = vmatprep.subr.bf16.mxu0 0
        %726 = vmatpush1.bf16.msra.mxu0 0
        %727 = vmatprep.subr.bf16.mxu0 0
        %728 = vmatpush1.bf16.msra.mxu0 0
        %729 = vmatprep.subr.bf16.mxu0 0
        %730 = vmatpush1.bf16.msra.mxu0 0
        %731 = vmatprep.subr.bf16.mxu0 0
        %732 = vmatpush1.bf16.msra.mxu0 0
        %733 = vmatprep.subr.bf16.mxu0 0
        %734 = vmatpush1.bf16.msra.mxu0 0
        %735 = vmatprep.subr.bf16.mxu0 0
        %736 = vmatpush1.bf16.msra.mxu0 0
        %737 = vmatprep.subr.bf16.mxu0 0
        %738 = vmatpush1.bf16.msra.mxu0 0
        %739 = vmatprep.subr.bf16.mxu0 0
        %740 = vmatpush1.bf16.msra.mxu0 %v723
        %741 = vmatprep.subr.bf16.mxu0 0
        %742 = vmatpush2.bf16.msra.mxu0 0
        %743 = vmatprep.subr.bf16.mxu0 0
        %744 = vmatpush2.bf16.msra.mxu0 0
        %745 = vmatprep.subr.bf16.mxu0 0
        %746 = vmatpush2.bf16.msra.mxu0 0
        %747 = vmatprep.subr.bf16.mxu0 0
        %748 = vmatpush2.bf16.msra.mxu0 0
        %749 = vmatprep.subr.bf16.mxu0 0
        %750 = vmatpush2.bf16.msra.mxu0 0
        %751 = vmatprep.subr.bf16.mxu0 0
        %752 = vmatpush2.bf16.msra.mxu0 0
        %753 = vmatprep.subr.bf16.mxu0 0
        %754 = vmatpush2.bf16.msra.mxu0 0
        %755 = vmatprep.subr.bf16.mxu0 0
        %756 = vmatpush2.bf16.msra.mxu0 0
        %757 = vmatprep.mubr.bf16.mxu0 0
        %758 = vmatmul.mubr.bf16.gmra.mxu0 %v717
        %v759 = vpop.f32.mrf.mxu0
        %v760 = vadd.f32 0.0, %v759
        %v761 = vpop.f32.mrf.mxu0
        %v762 = vpop.f32.mrf.mxu0
        %v763 = vadd.f32 0.0, %v762
        %v764 = vpop.f32.mrf.mxu0
        %765 = vmatprep.mubr.bf16.mxu0 0
        %766 = vmatmul.mubr.bf16.gmra.mxu0 %v720
        %v767 = vpop.f32.mrf.mxu0
        %v768 = vadd.f32 0.0, %v767
        %v769 = vpop.f32.mrf.mxu0
        %v770 = vpop.f32.mrf.mxu0
        %v771 = vadd.f32 0.0, %v770
        %v772 = vpop.f32.mrf.mxu0
        %773 = vdwg.mxu0
        %v774 = vadd.f32 %v694, %v760
        %v775 = vadd.f32 %v695, %v763
        %v776 = vadd.f32 %v696, %v768
        %v777 = vadd.f32 %v697, %v771
        %v778 = vld [vmem:[%s402] sm:$0xe]
        %v779 = vld [vmem:[%s402 + $0x4] sm:$0xf]
        %v780 = vld [vmem:[%s402 + $0x8] sm:$0x1]
        %v781 = vld [vmem:[%s402 + $0xc] sm:$0xe]
        %v782 = vld [vmem:[%s402 + $0x10] sm:$0xf]
        %v783 = vld [vmem:[%s402 + $0x14] sm:$0x1]
        %s784 = sadd.s32 %s434, 4
        %s785 = smul.addr %s784, 2
        %s786 = scalar_lea.vmem %s424, %s785
        %v787 = vld [vmem:[%s786] sm:$0x3]
        %v794 = vrot.slane %v778, 5
        %v795 = vrot.slane %v794, 4
        %v796 = vrot.slane %v779, 5
        %v797 = vsel %vm454, %v795, %v796
        %v798 = vrot.slane %v796, 4
        %v799 = vrot.slane %v780, 5
        %v800 = vsel %vm454, %v798, %v799
        %v801 = vrot.slane %v781, 5
        %v802 = vrot.slane %v801, 4
        %v803 = vrot.slane %v782, 5
        %v804 = vsel %vm454, %v802, %v803
        %v805 = vrot.slane %v803, 4
        %v806 = vrot.slane %v783, 5
        %v807 = vsel %vm454, %v805, %v806
        %v808 = vunpack.c.l.b16 %v797
        %v809 = vunpack.c.l.b16 %v800
        %v810 = vunpack.c.l.b16 %v804
        %v811 = vunpack.c.l.b16 %v807
        %v812 = vpack.c.b16 %v809, %v808
        %v813 = vpack.c.b16 %v811, %v810
        %v815 = vsel %vm475, %v812, 0
        %v818 = vsel %vm475, %v813, 0
        %v821 = vsel %vm482, %v787, 0
        %823 = vmatprep.subr.bf16.mxu0 0
        %824 = vmatpush1.bf16.msra.mxu0 0
        %825 = vmatprep.subr.bf16.mxu0 0
        %826 = vmatpush1.bf16.msra.mxu0 0
        %827 = vmatprep.subr.bf16.mxu0 0
        %828 = vmatpush1.bf16.msra.mxu0 0
        %829 = vmatprep.subr.bf16.mxu0 0
        %830 = vmatpush1.bf16.msra.mxu0 0
        %831 = vmatprep.subr.bf16.mxu0 0
        %832 = vmatpush1.bf16.msra.mxu0 0
        %833 = vmatprep.subr.bf16.mxu0 0
        %834 = vmatpush1.bf16.msra.mxu0 0
        %835 = vmatprep.subr.bf16.mxu0 0
        %836 = vmatpush1.bf16.msra.mxu0 0
        %837 = vmatprep.subr.bf16.mxu0 0
        %838 = vmatpush1.bf16.msra.mxu0 %v821
        %839 = vmatprep.subr.bf16.mxu0 0
        %840 = vmatpush2.bf16.msra.mxu0 0
        %841 = vmatprep.subr.bf16.mxu0 0
        %842 = vmatpush2.bf16.msra.mxu0 0
        %843 = vmatprep.subr.bf16.mxu0 0
        %844 = vmatpush2.bf16.msra.mxu0 0
        %845 = vmatprep.subr.bf16.mxu0 0
        %846 = vmatpush2.bf16.msra.mxu0 0
        %847 = vmatprep.subr.bf16.mxu0 0
        %848 = vmatpush2.bf16.msra.mxu0 0
        %849 = vmatprep.subr.bf16.mxu0 0
        %850 = vmatpush2.bf16.msra.mxu0 0
        %851 = vmatprep.subr.bf16.mxu0 0
        %852 = vmatpush2.bf16.msra.mxu0 0
        %853 = vmatprep.subr.bf16.mxu0 0
        %854 = vmatpush2.bf16.msra.mxu0 0
        %855 = vmatprep.mubr.bf16.mxu0 0
        %856 = vmatmul.mubr.bf16.gmra.mxu0 %v815
        %v857 = vpop.f32.mrf.mxu0
        %v858 = vadd.f32 0.0, %v857
        %v859 = vpop.f32.mrf.mxu0
        %v860 = vpop.f32.mrf.mxu0
        %v861 = vadd.f32 0.0, %v860
        %v862 = vpop.f32.mrf.mxu0
        %863 = vmatprep.mubr.bf16.mxu0 0
        %864 = vmatmul.mubr.bf16.gmra.mxu0 %v818
        %v865 = vpop.f32.mrf.mxu0
        %v866 = vadd.f32 0.0, %v865
        %v867 = vpop.f32.mrf.mxu0
        %v868 = vpop.f32.mrf.mxu0
        %v869 = vadd.f32 0.0, %v868
        %v870 = vpop.f32.mrf.mxu0
        %871 = vdwg.mxu0
        %v872 = vadd.f32 %v774, %v858
        %v873 = vadd.f32 %v775, %v861
        %v874 = vadd.f32 %v776, %v866
        %v875 = vadd.f32 %v777, %v869
        %v876 = vld [vmem:[%s402] sm:$0xc]
        %v877 = vld [vmem:[%s402 + $0x8] sm:$0x3]
        %v878 = vld [vmem:[%s402 + $0xc] sm:$0xc]
        %v879 = vld [vmem:[%s402 + $0x14] sm:$0x3]
        %s880 = sadd.s32 %s434, 5
        %s881 = smul.addr %s880, 2
        %s882 = scalar_lea.vmem %s424, %s881
        %v883 = vld [vmem:[%s882] sm:$0x3]
        %v888 = vrot.slane %v876, 6
        %v889 = vrot.slane %v888, 4
        %v890 = vrot.slane %v779, 6
        %v891 = vsel %vm615, %v889, %v890
        %v892 = vrot.slane %v890, 4
        %v893 = vrot.slane %v877, 6
        %v894 = vsel %vm615, %v892, %v893
        %v895 = vrot.slane %v878, 6
        %v896 = vrot.slane %v895, 4
        %v897 = vrot.slane %v782, 6
        %v898 = vsel %vm615, %v896, %v897
        %v899 = vrot.slane %v897, 4
        %v900 = vrot.slane %v879, 6
        %v901 = vsel %vm615, %v899, %v900
        %v902 = vunpack.c.l.b16 %v891
        %v903 = vunpack.c.l.b16 %v894
        %v904 = vunpack.c.l.b16 %v898
        %v905 = vunpack.c.l.b16 %v901
        %v906 = vpack.c.b16 %v903, %v902
        %v907 = vpack.c.b16 %v905, %v904
        %v909 = vsel %vm475, %v906, 0
        %v912 = vsel %vm475, %v907, 0
        %v915 = vsel %vm482, %v883, 0
        %917 = vmatprep.subr.bf16.mxu0 0
        %918 = vmatpush1.bf16.msra.mxu0 0
        %919 = vmatprep.subr.bf16.mxu0 0
        %920 = vmatpush1.bf16.msra.mxu0 0
        %921 = vmatprep.subr.bf16.mxu0 0
        %922 = vmatpush1.bf16.msra.mxu0 0
        %923 = vmatprep.subr.bf16.mxu0 0
        %924 = vmatpush1.bf16.msra.mxu0 0
        %925 = vmatprep.subr.bf16.mxu0 0
        %926 = vmatpush1.bf16.msra.mxu0 0
        %927 = vmatprep.subr.bf16.mxu0 0
        %928 = vmatpush1.bf16.msra.mxu0 0
        %929 = vmatprep.subr.bf16.mxu0 0
        %930 = vmatpush1.bf16.msra.mxu0 0
        %931 = vmatprep.subr.bf16.mxu0 0
        %932 = vmatpush1.bf16.msra.mxu0 %v915
        %933 = vmatprep.subr.bf16.mxu0 0
        %934 = vmatpush2.bf16.msra.mxu0 0
        %935 = vmatprep.subr.bf16.mxu0 0
        %936 = vmatpush2.bf16.msra.mxu0 0
        %937 = vmatprep.subr.bf16.mxu0 0
        %938 = vmatpush2.bf16.msra.mxu0 0
        %939 = vmatprep.subr.bf16.mxu0 0
        %940 = vmatpush2.bf16.msra.mxu0 0
        %941 = vmatprep.subr.bf16.mxu0 0
        %942 = vmatpush2.bf16.msra.mxu0 0
        %943 = vmatprep.subr.bf16.mxu0 0
        %944 = vmatpush2.bf16.msra.mxu0 0
        %945 = vmatprep.subr.bf16.mxu0 0
        %946 = vmatpush2.bf16.msra.mxu0 0
        %947 = vmatprep.subr.bf16.mxu0 0
        %948 = vmatpush2.bf16.msra.mxu0 0
        %949 = vmatprep.mubr.bf16.mxu0 0
        %950 = vmatmul.mubr.bf16.gmra.mxu0 %v909
        %v951 = vpop.f32.mrf.mxu0
        %v952 = vadd.f32 0.0, %v951
        %v953 = vpop.f32.mrf.mxu0
        %v954 = vpop.f32.mrf.mxu0
        %v955 = vadd.f32 0.0, %v954
        %v956 = vpop.f32.mrf.mxu0
        %957 = vmatprep.mubr.bf16.mxu0 0
        %958 = vmatmul.mubr.bf16.gmra.mxu0 %v912
        %v959 = vpop.f32.mrf.mxu0
        %v960 = vadd.f32 0.0, %v959
        %v961 = vpop.f32.mrf.mxu0
        %v962 = vpop.f32.mrf.mxu0
        %v963 = vadd.f32 0.0, %v962
        %v964 = vpop.f32.mrf.mxu0
        %965 = vdwg.mxu0
        %v966 = vadd.f32 %v872, %v952
        %v967 = vadd.f32 %v873, %v955
        %v968 = vadd.f32 %v874, %v960
        %v969 = vadd.f32 %v875, %v963
        %v970 = vld [vmem:[%s418] sm:$0xf]
        %v971 = vld [vmem:[%s418 + $0x4] sm:$0xf]
        %v972 = vld [vmem:[%s418 + $0xc] sm:$0xf]
        %v973 = vld [vmem:[%s418 + $0x10] sm:$0xf]
        %s974 = sadd.s32 %s434, 6
        %s975 = smul.addr %s974, 2
        %s976 = scalar_lea.vmem %s424, %s975
        %v977 = vld [vmem:[%s976] sm:$0x3]
        %v982 = vunpack.c.l.b16 %v970
        %v983 = vunpack.c.l.b16 %v971
        %v984 = vunpack.c.l.b16 %v972
        %v985 = vunpack.c.l.b16 %v973
        %v986 = vpack.c.b16 %v983, %v982
        %v987 = vpack.c.b16 %v985, %v984
        %v989 = vsel %vm475, %v986, 0
        %v992 = vsel %vm475, %v987, 0
        %v995 = vsel %vm482, %v977, 0
        %997 = vmatprep.subr.bf16.mxu0 0
        %998 = vmatpush1.bf16.msra.mxu0 0
        %999 = vmatprep.subr.bf16.mxu0 0
        %1000 = vmatpush1.bf16.msra.mxu0 0
        %1001 = vmatprep.subr.bf16.mxu0 0
        %1002 = vmatpush1.bf16.msra.mxu0 0
        %1003 = vmatprep.subr.bf16.mxu0 0
        %1004 = vmatpush1.bf16.msra.mxu0 0
        %1005 = vmatprep.subr.bf16.mxu0 0
        %1006 = vmatpush1.bf16.msra.mxu0 0
        %1007 = vmatprep.subr.bf16.mxu0 0
        %1008 = vmatpush1.bf16.msra.mxu0 0
        %1009 = vmatprep.subr.bf16.mxu0 0
        %1010 = vmatpush1.bf16.msra.mxu0 0
        %1011 = vmatprep.subr.bf16.mxu0 0
        %1012 = vmatpush1.bf16.msra.mxu0 %v995
        %1013 = vmatprep.subr.bf16.mxu0 0
        %1014 = vmatpush2.bf16.msra.mxu0 0
        %1015 = vmatprep.subr.bf16.mxu0 0
        %1016 = vmatpush2.bf16.msra.mxu0 0
        %1017 = vmatprep.subr.bf16.mxu0 0
        %1018 = vmatpush2.bf16.msra.mxu0 0
        %1019 = vmatprep.subr.bf16.mxu0 0
        %1020 = vmatpush2.bf16.msra.mxu0 0
        %1021 = vmatprep.subr.bf16.mxu0 0
        %1022 = vmatpush2.bf16.msra.mxu0 0
        %1023 = vmatprep.subr.bf16.mxu0 0
        %1024 = vmatpush2.bf16.msra.mxu0 0
        %1025 = vmatprep.subr.bf16.mxu0 0
        %1026 = vmatpush2.bf16.msra.mxu0 0
        %1027 = vmatprep.subr.bf16.mxu0 0
        %1028 = vmatpush2.bf16.msra.mxu0 0
        %1029 = vmatprep.mubr.bf16.mxu0 0
        %1030 = vmatmul.mubr.bf16.gmra.mxu0 %v989
        %v1031 = vpop.f32.mrf.mxu0
        %v1032 = vadd.f32 0.0, %v1031
        %v1033 = vpop.f32.mrf.mxu0
        %v1034 = vpop.f32.mrf.mxu0
        %v1035 = vadd.f32 0.0, %v1034
        %v1036 = vpop.f32.mrf.mxu0
        %1037 = vmatprep.mubr.bf16.mxu0 0
        %1038 = vmatmul.mubr.bf16.gmra.mxu0 %v992
        %v1039 = vpop.f32.mrf.mxu0
        %v1040 = vadd.f32 0.0, %v1039
        %v1041 = vpop.f32.mrf.mxu0
        %v1042 = vpop.f32.mrf.mxu0
        %v1043 = vadd.f32 0.0, %v1042
        %v1044 = vpop.f32.mrf.mxu0
        %1045 = vdwg.mxu0
        %v1046 = vadd.f32 %v966, %v1032
        %v1047 = vadd.f32 %v967, %v1035
        %v1048 = vadd.f32 %v968, %v1040
        %v1049 = vadd.f32 %v969, %v1043
        %v1050 = vld [vmem:[%s418] sm:$0xe]
        %v1051 = vld [vmem:[%s418 + $0x4] sm:$0xf]
        %v1052 = vld [vmem:[%s418 + $0x8] sm:$0x1]
        %v1053 = vld [vmem:[%s418 + $0xc] sm:$0xe]
        %v1054 = vld [vmem:[%s418 + $0x10] sm:$0xf]
        %v1055 = vld [vmem:[%s418 + $0x14] sm:$0x1]
        %s1056 = sadd.s32 %s434, 7
        %s1057 = smul.addr %s1056, 2
        %s1058 = scalar_lea.vmem %s424, %s1057
        %v1059 = vld [vmem:[%s1058] sm:$0x3]
        %v1066 = vrot.slane %v1050, 5
        %v1067 = vrot.slane %v1066, 4
        %v1068 = vrot.slane %v1051, 5
        %v1069 = vsel %vm454, %v1067, %v1068
        %v1070 = vrot.slane %v1068, 4
        %v1071 = vrot.slane %v1052, 5
        %v1072 = vsel %vm454, %v1070, %v1071
        %v1073 = vrot.slane %v1053, 5
        %v1074 = vrot.slane %v1073, 4
        %v1075 = vrot.slane %v1054, 5
        %v1076 = vsel %vm454, %v1074, %v1075
        %v1077 = vrot.slane %v1075, 4
        %v1078 = vrot.slane %v1055, 5
        %v1079 = vsel %vm454, %v1077, %v1078
        %v1080 = vunpack.c.l.b16 %v1069
        %v1081 = vunpack.c.l.b16 %v1072
        %v1082 = vunpack.c.l.b16 %v1076
        %v1083 = vunpack.c.l.b16 %v1079
        %v1084 = vpack.c.b16 %v1081, %v1080
        %v1085 = vpack.c.b16 %v1083, %v1082
        %v1087 = vsel %vm475, %v1084, 0
        %v1090 = vsel %vm475, %v1085, 0
        %v1093 = vsel %vm482, %v1059, 0
        %1095 = vmatprep.subr.bf16.mxu0 0
        %1096 = vmatpush1.bf16.msra.mxu0 0
        %1097 = vmatprep.subr.bf16.mxu0 0
        %1098 = vmatpush1.bf16.msra.mxu0 0
        %1099 = vmatprep.subr.bf16.mxu0 0
        %1100 = vmatpush1.bf16.msra.mxu0 0
        %1101 = vmatprep.subr.bf16.mxu0 0
        %1102 = vmatpush1.bf16.msra.mxu0 0
        %1103 = vmatprep.subr.bf16.mxu0 0
        %1104 = vmatpush1.bf16.msra.mxu0 0
        %1105 = vmatprep.subr.bf16.mxu0 0
        %1106 = vmatpush1.bf16.msra.mxu0 0
        %1107 = vmatprep.subr.bf16.mxu0 0
        %1108 = vmatpush1.bf16.msra.mxu0 0
        %1109 = vmatprep.subr.bf16.mxu0 0
        %1110 = vmatpush1.bf16.msra.mxu0 %v1093
        %1111 = vmatprep.subr.bf16.mxu0 0
        %1112 = vmatpush2.bf16.msra.mxu0 0
        %1113 = vmatprep.subr.bf16.mxu0 0
        %1114 = vmatpush2.bf16.msra.mxu0 0
        %1115 = vmatprep.subr.bf16.mxu0 0
        %1116 = vmatpush2.bf16.msra.mxu0 0
        %1117 = vmatprep.subr.bf16.mxu0 0
        %1118 = vmatpush2.bf16.msra.mxu0 0
        %1119 = vmatprep.subr.bf16.mxu0 0
        %1120 = vmatpush2.bf16.msra.mxu0 0
        %1121 = vmatprep.subr.bf16.mxu0 0
        %1122 = vmatpush2.bf16.msra.mxu0 0
        %1123 = vmatprep.subr.bf16.mxu0 0
        %1124 = vmatpush2.bf16.msra.mxu0 0
        %1125 = vmatprep.subr.bf16.mxu0 0
        %1126 = vmatpush2.bf16.msra.mxu0 0
        %1127 = vmatprep.mubr.bf16.mxu0 0
        %1128 = vmatmul.mubr.bf16.gmra.mxu0 %v1087
        %v1129 = vpop.f32.mrf.mxu0
        %v1130 = vadd.f32 0.0, %v1129
        %v1131 = vpop.f32.mrf.mxu0
        %v1132 = vpop.f32.mrf.mxu0
        %v1133 = vadd.f32 0.0, %v1132
        %v1134 = vpop.f32.mrf.mxu0
        %1135 = vmatprep.mubr.bf16.mxu0 0
        %1136 = vmatmul.mubr.bf16.gmra.mxu0 %v1090
        %v1137 = vpop.f32.mrf.mxu0
        %v1138 = vadd.f32 0.0, %v1137
        %v1139 = vpop.f32.mrf.mxu0
        %v1140 = vpop.f32.mrf.mxu0
        %v1141 = vadd.f32 0.0, %v1140
        %v1142 = vpop.f32.mrf.mxu0
        %1143 = vdwg.mxu0
        %v1144 = vadd.f32 %v1046, %v1130
        %v1145 = vadd.f32 %v1047, %v1133
        %v1146 = vadd.f32 %v1048, %v1138
        %v1147 = vadd.f32 %v1049, %v1141
        %v1148 = vld [vmem:[%s418] sm:$0xc]
        %v1149 = vld [vmem:[%s418 + $0x8] sm:$0x3]
        %v1150 = vld [vmem:[%s418 + $0xc] sm:$0xc]
        %v1151 = vld [vmem:[%s418 + $0x14] sm:$0x3]
        %s1152 = sadd.s32 %s434, 8
        %s1153 = smul.addr %s1152, 2
        %s1154 = scalar_lea.vmem %s424, %s1153
        %v1155 = vld [vmem:[%s1154] sm:$0x3]
        %v1160 = vrot.slane %v1148, 6
        %v1161 = vrot.slane %v1160, 4
        %v1162 = vrot.slane %v1051, 6
        %v1163 = vsel %vm615, %v1161, %v1162
        %v1164 = vrot.slane %v1162, 4
        %v1165 = vrot.slane %v1149, 6
        %v1166 = vsel %vm615, %v1164, %v1165
        %v1167 = vrot.slane %v1150, 6
        %v1168 = vrot.slane %v1167, 4
        %v1169 = vrot.slane %v1054, 6
        %v1170 = vsel %vm615, %v1168, %v1169
        %v1171 = vrot.slane %v1169, 4
        %v1172 = vrot.slane %v1151, 6
        %v1173 = vsel %vm615, %v1171, %v1172
        %v1174 = vunpack.c.l.b16 %v1163
        %v1175 = vunpack.c.l.b16 %v1166
        %v1176 = vunpack.c.l.b16 %v1170
        %v1177 = vunpack.c.l.b16 %v1173
        %v1178 = vpack.c.b16 %v1175, %v1174
        %v1179 = vpack.c.b16 %v1177, %v1176
        %v1181 = vsel %vm475, %v1178, 0
        %v1184 = vsel %vm475, %v1179, 0
        %v1187 = vsel %vm482, %v1155, 0
        %1189 = vmatprep.subr.bf16.mxu0 0
        %1190 = vmatpush1.bf16.msra.mxu0 0
        %1191 = vmatprep.subr.bf16.mxu0 0
        %1192 = vmatpush1.bf16.msra.mxu0 0
        %1193 = vmatprep.subr.bf16.mxu0 0
        %1194 = vmatpush1.bf16.msra.mxu0 0
        %1195 = vmatprep.subr.bf16.mxu0 0
        %1196 = vmatpush1.bf16.msra.mxu0 0
        %1197 = vmatprep.subr.bf16.mxu0 0
        %1198 = vmatpush1.bf16.msra.mxu0 0
        %1199 = vmatprep.subr.bf16.mxu0 0
        %1200 = vmatpush1.bf16.msra.mxu0 0
        %1201 = vmatprep.subr.bf16.mxu0 0
        %1202 = vmatpush1.bf16.msra.mxu0 0
        %1203 = vmatprep.subr.bf16.mxu0 0
        %1204 = vmatpush1.bf16.msra.mxu0 %v1187
        %1205 = vmatprep.subr.bf16.mxu0 0
        %1206 = vmatpush2.bf16.msra.mxu0 0
        %1207 = vmatprep.subr.bf16.mxu0 0
        %1208 = vmatpush2.bf16.msra.mxu0 0
        %1209 = vmatprep.subr.bf16.mxu0 0
        %1210 = vmatpush2.bf16.msra.mxu0 0
        %1211 = vmatprep.subr.bf16.mxu0 0
        %1212 = vmatpush2.bf16.msra.mxu0 0
        %1213 = vmatprep.subr.bf16.mxu0 0
        %1214 = vmatpush2.bf16.msra.mxu0 0
        %1215 = vmatprep.subr.bf16.mxu0 0
        %1216 = vmatpush2.bf16.msra.mxu0 0
        %1217 = vmatprep.subr.bf16.mxu0 0
        %1218 = vmatpush2.bf16.msra.mxu0 0
        %1219 = vmatprep.subr.bf16.mxu0 0
        %1220 = vmatpush2.bf16.msra.mxu0 0
        %1221 = vmatprep.mubr.bf16.mxu0 0
        %1222 = vmatmul.mubr.bf16.gmra.mxu0 %v1181
        %v1223 = vpop.f32.mrf.mxu0
        %v1224 = vadd.f32 0.0, %v1223
        %v1225 = vpop.f32.mrf.mxu0
        %v1226 = vpop.f32.mrf.mxu0
        %v1227 = vadd.f32 0.0, %v1226
        %v1228 = vpop.f32.mrf.mxu0
        %1229 = vmatprep.mubr.bf16.mxu0 0
        %1230 = vmatmul.mubr.bf16.gmra.mxu0 %v1184
        %v1231 = vpop.f32.mrf.mxu0
        %v1232 = vadd.f32 0.0, %v1231
        %v1233 = vpop.f32.mrf.mxu0
        %v1234 = vpop.f32.mrf.mxu0
        %v1235 = vadd.f32 0.0, %v1234
        %v1236 = vpop.f32.mrf.mxu0
        %1237 = vdwg.mxu0
        %v1238 = vadd.f32 %v1144, %v1224
        %v1239 = vadd.f32 %v1145, %v1227
        %v1240 = vadd.f32 %v1146, %v1232
        %v1241 = vadd.f32 %v1147, %v1235
        %p1242 = scmp.eq.s32.totalorder %s28, 0
        // Predicated region
        $region41: #{tpu_custom_call.1} parent=39 // pred_check
          %p1243 = pneg %p1242
        $region42: #{tpu_custom_call.1} parent=39 // pred_check_branch
          %1245 = sbr.rel (%p1243) target = $region44
        $region43: #{tpu_custom_call.1} parent=39 // pred_region
          %1246 = vst [vmem:[#allocation2] sm:$0xff] %v1238
          %1247 = vst [vmem:[#allocation2 + $0x8] sm:$0xff] %v1239
          %1248 = vst [vmem:[#allocation2 + $0x10] sm:$0xff] %v1240
          %1249 = vst [vmem:[#allocation2 + $0x18] sm:$0xff] %v1241
        $region44: #{tpu_custom_call.1} parent=39 // pred_fallthru
          _
        %p1250 = scmp.gt.s32.totalorder %s28, 0
        // Predicated region
        $region45: #{tpu_custom_call.1} parent=39 // pred_check
          %p1251 = pneg %p1250
        $region46: #{tpu_custom_call.1} parent=39 // pred_check_branch
          %1253 = sbr.rel (%p1251) target = $region48
        $region47: #{tpu_custom_call.1} parent=39 // pred_region
          %v1254 = vld [vmem:[#allocation2] sm:$0xff]
          %v1255 = vld [vmem:[#allocation2 + $0x8] sm:$0xff]
          %v1256 = vld [vmem:[#allocation2 + $0x10] sm:$0xff]
          %v1257 = vld [vmem:[#allocation2 + $0x18] sm:$0xff]
          %v1258 = vadd.f32 %v1254, %v1238
          %v1259 = vadd.f32 %v1255, %v1239
          %v1260 = vadd.f32 %v1256, %v1240
          %v1261 = vadd.f32 %v1257, %v1241
          %1262 = vst [vmem:[#allocation2] sm:$0xff] %v1258
          %1263 = vst [vmem:[#allocation2 + $0x8] sm:$0xff] %v1259
          %1264 = vst [vmem:[#allocation2 + $0x10] sm:$0xff] %v1260
          %1265 = vst [vmem:[#allocation2 + $0x18] sm:$0xff] %v1261
        $region48: #{tpu_custom_call.1} parent=39 // pred_fallthru
          _
        // Predicated region
        $region49: #{tpu_custom_call.1} parent=39 // pred_check
          %p1266 = pneg %p1242
        $region50: #{tpu_custom_call.1} parent=39 // pred_check_branch
          %1268 = sbr.rel (%p1266) target = $region52
        $region51: #{tpu_custom_call.1} parent=39 // pred_region
          %v1269 = vld [vmem:[#allocation2] sm:$0xff]
          %v1270 = vld [vmem:[#allocation2 + $0x8] sm:$0xff]
          %v1271 = vld [vmem:[#allocation2 + $0x10] sm:$0xff]
          %v1272 = vld [vmem:[#allocation2 + $0x18] sm:$0xff]
          %v1273 = vld [vmem:[%s427] sm:$0x1]
          %v1275 = vlaneseq
          %v1276 = vshrl.u32 %v1275, 7
          %v1277 = vsub.s32 0, %v1276
          %v1278 = vrot.slane %v1273, %v1277
          %v1280 = vadd.f32 %v1269, %v1278
          %v1281 = vadd.f32 %v1270, %v1278
          %v1282 = vadd.f32 %v1271, %v1278
          %v1283 = vadd.f32 %v1272, %v1278
          %v1284 = vmax.f32 %v1280, 0.0
          %v1285 = vmax.f32 %v1281, 0.0
          %v1286 = vmax.f32 %v1282, 0.0
          %v1287 = vmax.f32 %v1283, 0.0
          %1288 = vst [vmem:[%s374] sm:$0xff] %v1284
          %1289 = vst [vmem:[%s374 + $0x8] sm:$0xff] %v1285
          %1290 = vst [vmem:[%s374 + $0x10] sm:$0xff] %v1286
          %1291 = vst [vmem:[%s374 + $0x18] sm:$0xff] %v1287
        $region52: #{tpu_custom_call.1} parent=39 // pred_fallthru
          _
        %s1292 = sand.u32 %s203, 1
        %s1293 = scalar_lea.sflag [#allocation4], %s1292
        %s1294 = sand.u32 %s203, 1
        %s1295 = smul.addr %s1294, 32
        %s1296 = scalar_lea.vmem [#allocation3], %s1295
        // Predicated region
        $region53: #{tpu_custom_call.1} parent=39 // pred_check
          %p1297 = pneg %p213
        $region54: #{tpu_custom_call.1} parent=39 // pred_check_branch
          %1299 = sbr.rel (%p1297) target = $region56
        $region55: #{tpu_custom_call.1} parent=39 // pred_region
          %s1300 = smul.u32 4, %s26
          %s1302 = ssub.s32 512, 512
          %1303 = vsyncadd %s1293, %s1302
          %s1304 = sadd.s32 %s27, %s1300
          %s1305 = smul.addr %s25, 32
          %s1306 = sadd.s32 %s1304, %s1305
          %s1307 = smul.addr %s1306, 128
          %s1308 = scalar_lea.hbm %s5, %s1307
          %s1309 = sshll.u32 %s1296, 4
          %s1310 = int_to_ptr.vmem [resolvable:$true] %s1309
          %1315 = dma.vmem_to_hbm [thread:$0]  %s1310, 512, %s1308, %s1293, 128, 128, 8
        $region56: #{tpu_custom_call.1} parent=39 // pred_fallthru
          _
      $region40: #{tpu_custom_call.1} parent=5 // pred_fallthru
        _
      %p1316 = scmp.le.s32.totalorder 2, %s14
      // Predicated region
      $region57: #{tpu_custom_call.1} parent=5 // pred_check
        %p1317 = pneg %p1316
      $region58: #{tpu_custom_call.1} parent=5 // pred_check_branch
        %1319 = sbr.rel (%p1317) target = $region60
      $region59: #{tpu_custom_call.1} parent=5 // pred_region
        %s1320 = ssub.s32 %s14, 2
        // Predicated region
        $region61: #{tpu_custom_call.1} parent=59 // pred_check
          %p1321 = pneg %p219
        $region62: #{tpu_custom_call.1} parent=59 // pred_check_branch
          %1323 = sbr.rel (%p1321) target = $region64
        $region63: #{tpu_custom_call.1} parent=59 // pred_region
          %s1324 = sand.u32 %s204, 1
          %s1325 = scalar_lea.sflag [#allocation4], %s1324
          %s1326 = sand.u32 %s204, 1
          %s1327 = smul.addr %s1326, 32
          %s1328 = scalar_lea.vmem [#allocation3], %s1327
          %1329 = dma.done %s1325, 512
        $region64: #{tpu_custom_call.1} parent=59 // pred_fallthru
          _
      $region60: #{tpu_custom_call.1} parent=5 // pred_fallthru
        _
    $region6: #{tpu_custom_call.1} parent=1 // loop_footer
      %s18 = sadd.s32 1, %s14
    $region7: #{tpu_custom_call.1} parent=1 // loop_footer_branch
      %13 = sbr.rel target = $region3
    $region8: #{tpu_custom_call.1} parent=1 // loop_exit
      _
    %1330 = vsyncpa [#allocation4], 1
    %s1331 = scalar_lea.sflag [#allocation4], 1
    %1332 = vsyncpa %s1331, 1

</llo_original>
